<compile_context>
chip_gen: v6e
topology: v6e:2x2x1
jax: 0.10.0
libtpu: 0.0.40
codegen_flags: <defaults>
</compile_context>

<pallas_src>
import jax
import jax.numpy as jnp
from jax import lax
from jax.experimental import pallas as pl
from jax.experimental.pallas import tpu as pltpu


# ---------------------------------------------------------------------------
# GRU cell (PyTorch gate order: r, z, n) — used by the pure-JAX reference.
# ---------------------------------------------------------------------------
def _gru_cell(x_t, h, w_ih, w_hh, b_ih, b_hh, H):
    # x_t: (B, I), h: (B, H), w_ih: (I, 3H), w_hh: (H, 3H), biases: (1, 3H)
    gi = jnp.dot(x_t, w_ih, preferred_element_type=jnp.float32) + b_ih
    gh = jnp.dot(h, w_hh, preferred_element_type=jnp.float32) + b_hh
    r = jax.nn.sigmoid(gi[:, 0 * H:1 * H] + gh[:, 0 * H:1 * H])
    z = jax.nn.sigmoid(gi[:, 1 * H:2 * H] + gh[:, 1 * H:2 * H])
    n = jnp.tanh(gi[:, 2 * H:3 * H] + r * gh[:, 2 * H:3 * H])
    return (1.0 - z) * n + z * h


# ---------------------------------------------------------------------------
# Teacher-forcing kernel.
#   x_ref:   (T*B, I)   flattened time-major decoder inputs
#   h0_ref:  (B, H)     initial hidden state (H already 128-padded)
#   weights: gate-padded / row-padded in the wrapper
#   out_ref: (T*B, IP)  lane-dense (IP = 128-padded output channels)
# ---------------------------------------------------------------------------
def _teacher_forcing_kernel(x_ref, h0_ref, wih_ref, bih_ref, whh_ref, bhh_ref,
                            wf_ref, bf_ref, out_ref, gi_scr, hall_scr):
    B, H = h0_ref.shape
    T = x_ref.shape[0] // B

    # (1) Hoisted input->hidden projection for the whole sequence: one matmul.
    gi_scr[...] = (jnp.dot(x_ref[...], wih_ref[...],
                           preferred_element_type=jnp.float32) + bih_ref[...])

    # Hoist the (1, 3H) -> (B, 3H) bias broadcast out of the unrolled loop.
    bhh_b = jnp.broadcast_to(bhh_ref[...], (B, 3 * H))

    # (2) Recurrence: h carried in registers, one recurrent matmul per step.
    #     Weights are read from VMEM refs inside the loop (not pinned in vregs).
    def step(t, h):
        row = pl.multiple_of(t * B, B)
        gi = gi_scr[pl.ds(row, B), :]
        gh = jnp.dot(h, whh_ref[...], preferred_element_type=jnp.float32) + bhh_b
        r = jax.nn.sigmoid(gi[:, 0 * H:1 * H] + gh[:, 0 * H:1 * H])
        z = jax.nn.sigmoid(gi[:, 1 * H:2 * H] + gh[:, 1 * H:2 * H])
        n = jnp.tanh(gi[:, 2 * H:3 * H] + r * gh[:, 2 * H:3 * H])
        h_new = (1.0 - z) * n + z * h
        hall_scr[pl.ds(row, B), :] = h_new
        return h_new

    lax.fori_loop(0, T, step, h0_ref[...], unroll=True if T <= 16 else 8)

    # (3) Conv1d(kernel_size=1) head: one bulk matmul + one lane-dense store.
    out_ref[...] = (jnp.dot(hall_scr[...], wf_ref[...],
                            preferred_element_type=jnp.float32) + bf_ref[...])


# ---------------------------------------------------------------------------
# Free-running kernel (fused feedback).
#   gi0_ref:   (1, 3H)  input gates of step 0 (from first_input; param-only)
#   wstep_ref: (H, 4H)  [W_xi_r+W_hh_r | W_xi_z+W_hh_z | W_xi_n | W_hh_n]
#   bstep_ref: (1, 4H)  matching fused biases
#   out_ref:   (T*B, IP)
# ---------------------------------------------------------------------------
def _free_running_kernel(h0_ref, gi0_ref, whh_ref, bhh_ref, wstep_ref, bstep_ref,
                         wf_ref, bf_ref, out_ref, hall_scr):
    B, H = h0_ref.shape
    T = out_ref.shape[0] // B

    # Step 0: x_0 = first_input (its input-gate contribution is precomputed).
    h0 = h0_ref[...]
    gi0 = gi0_ref[...]                      # (1, 3H) broadcasts over batch
    gh0 = (jnp.dot(h0, whh_ref[...], preferred_element_type=jnp.float32)
           + bhh_ref[...])
    r = jax.nn.sigmoid(gi0[:, 0 * H:1 * H] + gh0[:, 0 * H:1 * H])
    z = jax.nn.sigmoid(gi0[:, 1 * H:2 * H] + gh0[:, 1 * H:2 * H])
    n = jnp.tanh(gi0[:, 2 * H:3 * H] + r * gh0[:, 2 * H:3 * H])
    h1 = (1.0 - z) * n + z * h0
    hall_scr[pl.ds(0, B), :] = h1

    # Hoist the (1, 4H) -> (B, 4H) bias broadcast out of the unrolled loop.
    bstep_b = jnp.broadcast_to(bstep_ref[...], (B, 4 * H))

    # Steps 1..T-1: the feedback x_t = h_t @ w_f + b_f is folded into wstep,
    # so each step is exactly one (B,H)@(H,4H) matmul + VPU/EUP gate math.
    def step(t, h):
        g = jnp.dot(h, wstep_ref[...], preferred_element_type=jnp.float32) + bstep_b
        r = jax.nn.sigmoid(g[:, 0 * H:1 * H])
        z = jax.nn.sigmoid(g[:, 1 * H:2 * H])
        n = jnp.tanh(g[:, 2 * H:3 * H] + r * g[:, 3 * H:4 * H])
        h_new = (1.0 - z) * n + z * h
        row = pl.multiple_of(t * B, B)
        hall_scr[pl.ds(row, B), :] = h_new
        return h_new

    lax.fori_loop(1, T, step, h1, unroll=True if T <= 16 else 8)

    # Bulk output projection + single lane-dense store.
    out_ref[...] = (jnp.dot(hall_scr[...], wf_ref[...],
                            preferred_element_type=jnp.float32) + bf_ref[...])


# ---------------------------------------------------------------------------
# Parameter init (deterministic, PyTorch-like uniform(-1/sqrt(H), 1/sqrt(H))).
# ---------------------------------------------------------------------------
def init_params(key, hidden_size, input_size=1):
    k = 1.0 / float(hidden_size) ** 0.5
    ks = jax.random.split(key, 7)
    u = lambda kk, shape: jax.random.uniform(kk, shape, jnp.float32, -k, k)
    return {
        # GRU weights stored pre-transposed: x @ w_ih, h @ w_hh (gate order r,z,n)
        "w_ih": u(ks[0], (input_size, 3 * hidden_size)),
        "w_hh": u(ks[1], (hidden_size, 3 * hidden_size)),
        "b_ih": u(ks[2], (3 * hidden_size,)),
        "b_hh": u(ks[3], (3 * hidden_size,)),
        # Conv1d(hidden_size -> input_size, kernel_size=1) == matmul + bias
        "w_ffn": u(ks[4], (hidden_size, input_size)),
        "b_ffn": u(ks[5], (input_size,)),
        # first decoder input (PyTorch: zeros)
        "first_input": jnp.zeros((input_size,), jnp.float32),
    }


# ---------------------------------------------------------------------------
# Wrapper glue: padding helpers (param-only layout transforms).
# ---------------------------------------------------------------------------
def _round_up(x, m):
    return ((x + m - 1) // m) * m


def _pad_gates(w, H, HP, n_gates):
    """(rows, n_gates*H) -> (rows, n_gates*HP), each gate block lane-aligned."""
    out = jnp.zeros((w.shape[0], n_gates * HP), w.dtype)
    for g in range(n_gates):
        out = out.at[:, g * HP:g * HP + H].set(w[:, g * H:(g + 1) * H])
    return out


def _pad_rows(w, H, HP):
    """(H, ...) -> (HP, ...), zero rows appended."""
    return jnp.zeros((HP,) + w.shape[1:], w.dtype).at[:H].set(w)


def _pad_cols(w, I, IP):
    """(..., I) -> (..., IP), zero columns appended (lane-dense output)."""
    return jnp.zeros(w.shape[:-1] + (IP,), w.dtype).at[..., :I].set(w)


# ---------------------------------------------------------------------------
# Wrapper: matches GRUDecoder.forward semantics.
# ---------------------------------------------------------------------------
def gru_decoder_forward(params, vectors, targets, mode="teacher_forcing"):
    """vectors: (B, H), targets: (B, T, I) -> (B, T, I)"""
    B, H = vectors.shape
    T = targets.shape[1]
    I = params["first_input"].shape[0]

    HP = _round_up(H, 128)        # lane-align each gate block
    BP = _round_up(B, 8)          # sublane-align the batch
    IP = _round_up(I, 128)        # lane-dense output store

    f32 = jnp.float32
    w_ih, w_hh = params["w_ih"].astype(f32), params["w_hh"].astype(f32)
    b_ih, b_hh = params["b_ih"].astype(f32), params["b_hh"].astype(f32)
    w_f, b_f = params["w_ffn"].astype(f32), params["b_ffn"].astype(f32)
    first = params["first_input"].astype(f32)

    # Padded / lane-aligned parameters (param-only transforms).
    w_hh_p = _pad_rows(_pad_gates(w_hh, H, HP, 3), H, HP)        # (HP, 3HP)
    b_hh_p = _pad_gates(b_hh.reshape(1, -1), H, HP, 3)           # (1, 3HP)
    w_f_p = _pad_cols(_pad_rows(w_f, H, HP), I, IP)              # (HP, IP)
    b_f_p = _pad_cols(b_f.reshape(1, -1), I, IP)                 # (1, IP)

    # Padded initial hidden state (num_layers == 1); padded rows/cols are zero.
    h0_p = jnp.zeros((BP, HP), f32).at[:B, :H].set(vectors.astype(f32))

    vmem = pl.BlockSpec(memory_space=pltpu.MemorySpace.VMEM)

    def unpack(out2d):
        # (T*BP, IP) -> (B, T, I)
        return jnp.transpose(out2d.reshape(T, BP, IP), (1, 0, 2))[:B, :, :I]

    if mode == "teacher_forcing":
        w_ih_p = _pad_gates(w_ih, H, HP, 3)                      # (I, 3HP)
        b_ih_p = _pad_gates(b_ih.reshape(1, -1), H, HP, 3)       # (1, 3HP)

        first_b = jnp.broadcast_to(first[None, None, :], (B, 1, I))
        dec_in = jnp.concatenate([first_b, targets[:, :-1, :]], axis=1)  # (B,T,I)
        dec_in = jnp.zeros((BP, T, I), f32).at[:B].set(dec_in.astype(f32))
        x2d = jnp.transpose(dec_in, (1, 0, 2)).reshape(T * BP, I)        # (T*BP,I)

        out2d = pl.pallas_call(
            _teacher_forcing_kernel,
            out_shape=jax.ShapeDtypeStruct((T * BP, IP), f32),
            in_specs=[vmem] * 8,
            out_specs=vmem,
            scratch_shapes=[pltpu.VMEM((T * BP, 3 * HP), f32),   # gi_all
                            pltpu.VMEM((T * BP, HP), f32)],      # h_all
        )(x2d, h0_p, w_ih_p, b_ih_p, w_hh_p, b_hh_p, w_f_p, b_f_p)
        return unpack(out2d)

    assert mode == "free_running"
    # Fold the output feedback into the recurrent weights (param-only):
    #   gi_t = x_t @ w_ih + b_ih = h_t @ (w_f @ w_ih) + (b_f @ w_ih + b_ih)
    W_xi = w_f @ w_ih                                            # (H, 3H)
    b_xi = b_f @ w_ih + b_ih                                     # (3H,)
    w_step = jnp.concatenate(
        [W_xi[:, :2 * H] + w_hh[:, :2 * H], W_xi[:, 2 * H:], w_hh[:, 2 * H:]],
        axis=1)                                                  # (H, 4H)
    b_step = jnp.concatenate(
        [b_xi[:2 * H] + b_hh[:2 * H], b_xi[2 * H:], b_hh[2 * H:]])  # (4H,)
    w_step_p = _pad_rows(_pad_gates(w_step, H, HP, 4), H, HP)    # (HP, 4HP)
    b_step_p = _pad_gates(b_step.reshape(1, -1), H, HP, 4)       # (1, 4HP)
    gi0 = first @ w_ih + b_ih                                    # (3H,)
    gi0_p = _pad_gates(gi0.reshape(1, -1), H, HP, 3)             # (1, 3HP)

    out2d = pl.pallas_call(
        _free_running_kernel,
        out_shape=jax.ShapeDtypeStruct((T * BP, IP), f32),
        in_specs=[vmem] * 8,
        out_specs=vmem,
        scratch_shapes=[pltpu.VMEM((T * BP, HP), f32)],          # h_all
    )(h0_p, gi0_p, w_hh_p, b_hh_p, w_step_p, b_step_p, w_f_p, b_f_p)
    return unpack(out2d)


# ---------------------------------------------------------------------------
# Pure-JAX reference (mirrors torch.nn.GRU + Conv1d(kernel_size=1) math).
# ---------------------------------------------------------------------------
def _ref_forward(params, vectors, targets, mode="teacher_forcing"):
    B, H = vectors.shape
    T = targets.shape[1]
    I = params["first_input"].shape[0]
    b_ih = params["b_ih"][None, :]
    b_hh = params["b_hh"][None, :]

    def cell(x_t, h):
        return _gru_cell(x_t, h, params["w_ih"], params["w_hh"], b_ih, b_hh, H)

    proj = lambda h: h @ params["w_ffn"] + params["b_ffn"][None, :]

    if mode == "teacher_forcing":
        first = jnp.broadcast_to(params["first_input"][None, None, :], (B, 1, I))
        dec_in = jnp.concatenate([first, targets[:, :-1, :]], axis=1)
        x_tbi = jnp.transpose(dec_in, (1, 0, 2))

        def step(h, x_t):
            h_new = cell(x_t, h)
            return h_new, proj(h_new)

        _, ys = lax.scan(step, vectors, x_tbi)
        return jnp.transpose(ys, (1, 0, 2))

    first = jnp.broadcast_to(params["first_input"][None, :], (B, I))

    def step(carry, _):
        h, x_t = carry
        h_new = cell(x_t, h)
        y = proj(h_new)
        return (h_new, y), y

    _, ys = lax.scan(step, (vectors, first), None, length=T)
    return jnp.transpose(ys, (1, 0, 2))


if __name__ == "__main__":
    B, H, I, T = 2, 32, 1, 8

    key = jax.random.PRNGKey(0)
    k_param, k_vec, k_tgt = jax.random.split(key, 3)

    params = init_params(k_param, hidden_size=H, input_size=I)
    vectors = jax.random.normal(k_vec, (B, H), jnp.float32)
    targets = jax.random.normal(k_tgt, (B, T, I), jnp.float32)

    # teacher forcing (default mode)
    out_tf = gru_decoder_forward(params, vectors, targets, mode="teacher_forcing")
    out_tf = jax.block_until_ready(out_tf)
    ref_tf = _ref_forward(params, vectors, targets, mode="teacher_forcing")
    assert out_tf.shape == (B, T, I)
    assert jnp.allclose(out_tf, ref_tf, atol=2e-5, rtol=2e-5), \
        float(jnp.max(jnp.abs(out_tf - ref_tf)))

    # free running (fused-feedback kernel; mildly reassociated FP sums)
    out_fr = gru_decoder_forward(params, vectors, targets, mode="free_running")
    out_fr = jax.block_until_ready(out_fr)
    ref_fr = _ref_forward(params, vectors, targets, mode="free_running")
    assert out_fr.shape == (B, T, I)
    assert jnp.allclose(out_fr, ref_fr, atol=2e-5, rtol=2e-5), \
        float(jnp.max(jnp.abs(out_fr - ref_fr)))

    print("KERNEL_OK")
</pallas_src>

<mosaic_0001>
module attributes {stable_mosaic.version = 11 : i64} {
  func.func @_teacher_forcing_kernel(%arg0: memref<64x1xf32, #tpu.memory_space<vmem>>, %arg1: memref<8x128xf32, #tpu.memory_space<vmem>>, %arg2: memref<1x384xf32, #tpu.memory_space<vmem>>, %arg3: memref<1x384xf32, #tpu.memory_space<vmem>>, %arg4: memref<128x384xf32, #tpu.memory_space<vmem>>, %arg5: memref<1x384xf32, #tpu.memory_space<vmem>>, %arg6: memref<128x128xf32, #tpu.memory_space<vmem>>, %arg7: memref<1x128xf32, #tpu.memory_space<vmem>>, %arg8: memref<64x128xf32, #tpu.memory_space<vmem>>, %arg9: memref<64x384xf32, #tpu.memory_space<vmem>>, %arg10: memref<64x128xf32, #tpu.memory_space<vmem>>) attributes {dimension_semantics = [], scalar_prefetch = 0 : i64, scratch_operands = 2 : i64, tpu.core_type = #tpu.core_type<tc>} {
    %c0 = arith.constant 0 : index
    %c0_0 = arith.constant 0 : index
    %0 = vector.load %arg0[%c0, %c0_0] : memref<64x1xf32, #tpu.memory_space<vmem>>, vector<64x1xf32>
    %c0_1 = arith.constant 0 : index
    %c0_2 = arith.constant 0 : index
    %1 = vector.load %arg2[%c0_1, %c0_2] : memref<1x384xf32, #tpu.memory_space<vmem>>, vector<1x384xf32>
    %cst = arith.constant dense<0.000000e+00> : vector<64x384xf32>
    %2 = tpu.matmul %0, %1, %cst {dimension_numbers = #tpu.dot_dimension_numbers<[1], [0], [0], [1], [0, 0, 1, 1], [], []>} : vector<64x1xf32>, vector<1x384xf32>, vector<64x384xf32> -> vector<64x384xf32>
    %c0_3 = arith.constant 0 : index
    %c0_4 = arith.constant 0 : index
    %3 = vector.load %arg3[%c0_3, %c0_4] : memref<1x384xf32, #tpu.memory_space<vmem>>, vector<1x384xf32>
    %4 = vector.broadcast %3 : vector<1x384xf32> to vector<64x384xf32>
    %5 = arith.addf %2, %4 : vector<64x384xf32>
    %c0_5 = arith.constant 0 : index
    %c0_6 = arith.constant 0 : index
    %6 = vector.load %arg9[%c0_5, %c0_6] : memref<64x384xf32, #tpu.memory_space<vmem>>, vector<64x384xf32>
    tpu.vector_store %arg9[%c0_5, %c0_6], %5 {strides = array<i32>} : memref<64x384xf32, #tpu.memory_space<vmem>>, vector<64x384xf32>,
    %c0_7 = arith.constant 0 : index
    %c0_8 = arith.constant 0 : index
    %7 = vector.load %arg5[%c0_7, %c0_8] : memref<1x384xf32, #tpu.memory_space<vmem>>, vector<1x384xf32>
    %8 = vector.shape_cast %7 : vector<1x384xf32> to vector<1x384xf32>
    %9 = vector.broadcast %8 : vector<1x384xf32> to vector<8x384xf32>
    %c0_9 = arith.constant 0 : index
    %c0_10 = arith.constant 0 : index
    %10 = vector.load %arg1[%c0_9, %c0_10] : memref<8x128xf32, #tpu.memory_space<vmem>>, vector<8x128xf32>
    %c0_i32 = arith.constant 0 : i32
    %c8_i32 = arith.constant 8 : i32
    %11 = arith.muli %c0_i32, %c8_i32 : i32
    %12 = tpu.assume_multiple %11, 8 : i32
    %13 = arith.index_cast %12 : i32 to index
    %c0_11 = arith.constant 0 : index
    %14 = vector.load %arg9[%13, %c0_11] : memref<64x384xf32, #tpu.memory_space<vmem>>, vector<8x384xf32>
    %c0_12 = arith.constant 0 : index
    %c0_13 = arith.constant 0 : index
    %15 = vector.load %arg4[%c0_12, %c0_13] : memref<128x384xf32, #tpu.memory_space<vmem>>, vector<128x384xf32>
    %cst_14 = arith.constant dense<0.000000e+00> : vector<8x384xf32>
    %16 = tpu.matmul %10, %15, %cst_14 {dimension_numbers = #tpu.dot_dimension_numbers<[1], [0], [0], [1], [0, 0, 1, 1], [], []>} : vector<8x128xf32>, vector<128x384xf32>, vector<8x384xf32> -> vector<8x384xf32>
    %17 = arith.addf %16, %9 : vector<8x384xf32>
    %18 = vector.extract_strided_slice %14 {offsets = [0, 0], sizes = [8, 128], strides = [1, 1]} : vector<8x384xf32> to vector<8x128xf32>
    %19 = vector.extract_strided_slice %17 {offsets = [0, 0], sizes = [8, 128], strides = [1, 1]} : vector<8x384xf32> to vector<8x128xf32>
    %20 = arith.addf %18, %19 : vector<8x128xf32>
    %21 = arith.negf %20 : vector<8x128xf32>
    %22 = math.exp %21 : vector<8x128xf32>
    %cst_15 = arith.constant 1.000000e+00 : f32
    %23 = vector.broadcast %cst_15 : f32 to vector<8x128xf32>
    %24 = arith.addf %23, %22 : vector<8x128xf32>
    %25 = arith.divf %23, %24 : vector<8x128xf32>
    %26 = vector.extract_strided_slice %14 {offsets = [0, 128], sizes = [8, 128], strides = [1, 1]} : vector<8x384xf32> to vector<8x128xf32>
    %27 = vector.extract_strided_slice %17 {offsets = [0, 128], sizes = [8, 128], strides = [1, 1]} : vector<8x384xf32> to vector<8x128xf32>
    %28 = arith.addf %26, %27 : vector<8x128xf32>
    %29 = arith.negf %28 : vector<8x128xf32>
    %30 = math.exp %29 : vector<8x128xf32>
    %cst_16 = arith.constant 1.000000e+00 : f32
    %31 = vector.broadcast %cst_16 : f32 to vector<8x128xf32>
    %32 = arith.addf %31, %30 : vector<8x128xf32>
    %33 = arith.divf %31, %32 : vector<8x128xf32>
    %34 = vector.extract_strided_slice %14 {offsets = [0, 256], sizes = [8, 128], strides = [1, 1]} : vector<8x384xf32> to vector<8x128xf32>
    %35 = vector.extract_strided_slice %17 {offsets = [0, 256], sizes = [8, 128], strides = [1, 1]} : vector<8x384xf32> to vector<8x128xf32>
    %36 = arith.mulf %25, %35 : vector<8x128xf32>
    %37 = arith.addf %34, %36 : vector<8x128xf32>
    %38 = math.tanh %37 : vector<8x128xf32>
    %cst_17 = arith.constant 1.000000e+00 : f32
    %39 = vector.broadcast %cst_17 : f32 to vector<8x128xf32>
    %40 = arith.subf %39, %33 : vector<8x128xf32>
    %41 = arith.mulf %40, %38 : vector<8x128xf32>
    %42 = arith.mulf %33, %10 : vector<8x128xf32>
    %43 = arith.addf %41, %42 : vector<8x128xf32>
    %44 = arith.index_cast %12 : i32 to index
    %c0_18 = arith.constant 0 : index
    %45 = vector.load %arg10[%44, %c0_18] : memref<64x128xf32, #tpu.memory_space<vmem>>, vector<8x128xf32>
    tpu.vector_store %arg10[%44, %c0_18], %43 {strides = array<i32>} : memref<64x128xf32, #tpu.memory_space<vmem>>, vector<8x128xf32>,
    %c1_i32 = arith.constant 1 : i32
    %c8_i32_19 = arith.constant 8 : i32
    %46 = arith.muli %c1_i32, %c8_i32_19 : i32
    %47 = tpu.assume_multiple %46, 8 : i32
    %48 = arith.index_cast %47 : i32 to index
    %c0_20 = arith.constant 0 : index
    %49 = vector.load %arg9[%48, %c0_20] : memref<64x384xf32, #tpu.memory_space<vmem>>, vector<8x384xf32>
    %c0_21 = arith.constant 0 : index
    %c0_22 = arith.constant 0 : index
    %50 = vector.load %arg4[%c0_21, %c0_22] : memref<128x384xf32, #tpu.memory_space<vmem>>, vector<128x384xf32>
    %cst_23 = arith.constant dense<0.000000e+00> : vector<8x384xf32>
    %51 = tpu.matmul %43, %50, %cst_23 {dimension_numbers = #tpu.dot_dimension_numbers<[1], [0], [0], [1], [0, 0, 1, 1], [], []>} : vector<8x128xf32>, vector<128x384xf32>, vector<8x384xf32> -> vector<8x384xf32>
    %52 = arith.addf %51, %9 : vector<8x384xf32>
    %53 = vector.extract_strided_slice %49 {offsets = [0, 0], sizes = [8, 128], strides = [1, 1]} : vector<8x384xf32> to vector<8x128xf32>
    %54 = vector.extract_strided_slice %52 {offsets = [0, 0], sizes = [8, 128], strides = [1, 1]} : vector<8x384xf32> to vector<8x128xf32>
    %55 = arith.addf %53, %54 : vector<8x128xf32>
    %56 = arith.negf %55 : vector<8x128xf32>
    %57 = math.exp %56 : vector<8x128xf32>
    %cst_24 = arith.constant 1.000000e+00 : f32
    %58 = vector.broadcast %cst_24 : f32 to vector<8x128xf32>
    %59 = arith.addf %58, %57 : vector<8x128xf32>
    %60 = arith.divf %58, %59 : vector<8x128xf32>
    %61 = vector.extract_strided_slice %49 {offsets = [0, 128], sizes = [8, 128], strides = [1, 1]} : vector<8x384xf32> to vector<8x128xf32>
    %62 = vector.extract_strided_slice %52 {offsets = [0, 128], sizes = [8, 128], strides = [1, 1]} : vector<8x384xf32> to vector<8x128xf32>
    %63 = arith.addf %61, %62 : vector<8x128xf32>
    %64 = arith.negf %63 : vector<8x128xf32>
    %65 = math.exp %64 : vector<8x128xf32>
    %cst_25 = arith.constant 1.000000e+00 : f32
    %66 = vector.broadcast %cst_25 : f32 to vector<8x128xf32>
    %67 = arith.addf %66, %65 : vector<8x128xf32>
    %68 = arith.divf %66, %67 : vector<8x128xf32>
    %69 = vector.extract_strided_slice %49 {offsets = [0, 256], sizes = [8, 128], strides = [1, 1]} : vector<8x384xf32> to vector<8x128xf32>
    %70 = vector.extract_strided_slice %52 {offsets = [0, 256], sizes = [8, 128], strides = [1, 1]} : vector<8x384xf32> to vector<8x128xf32>
    %71 = arith.mulf %60, %70 : vector<8x128xf32>
    %72 = arith.addf %69, %71 : vector<8x128xf32>
    %73 = math.tanh %72 : vector<8x128xf32>
    %cst_26 = arith.constant 1.000000e+00 : f32
    %74 = vector.broadcast %cst_26 : f32 to vector<8x128xf32>
    %75 = arith.subf %74, %68 : vector<8x128xf32>
    %76 = arith.mulf %75, %73 : vector<8x128xf32>
    %77 = arith.mulf %68, %43 : vector<8x128xf32>
    %78 = arith.addf %76, %77 : vector<8x128xf32>
    %79 = arith.index_cast %47 : i32 to index
    %c0_27 = arith.constant 0 : index
    %80 = vector.load %arg10[%79, %c0_27] : memref<64x128xf32, #tpu.memory_space<vmem>>, vector<8x128xf32>
    tpu.vector_store %arg10[%79, %c0_27], %78 {strides = array<i32>} : memref<64x128xf32, #tpu.memory_space<vmem>>, vector<8x128xf32>,
    %c2_i32 = arith.constant 2 : i32
    %c8_i32_28 = arith.constant 8 : i32
    %81 = arith.muli %c2_i32, %c8_i32_28 : i32
    %82 = tpu.assume_multiple %81, 8 : i32
    %83 = arith.index_cast %82 : i32 to index
    %c0_29 = arith.constant 0 : index
    %84 = vector.load %arg9[%83, %c0_29] : memref<64x384xf32, #tpu.memory_space<vmem>>, vector<8x384xf32>
    %c0_30 = arith.constant 0 : index
    %c0_31 = arith.constant 0 : index
    %85 = vector.load %arg4[%c0_30, %c0_31] : memref<128x384xf32, #tpu.memory_space<vmem>>, vector<128x384xf32>
    %cst_32 = arith.constant dense<0.000000e+00> : vector<8x384xf32>
    %86 = tpu.matmul %78, %85, %cst_32 {dimension_numbers = #tpu.dot_dimension_numbers<[1], [0], [0], [1], [0, 0, 1, 1], [], []>} : vector<8x128xf32>, vector<128x384xf32>, vector<8x384xf32> -> vector<8x384xf32>
    %87 = arith.addf %86, %9 : vector<8x384xf32>
    %88 = vector.extract_strided_slice %84 {offsets = [0, 0], sizes = [8, 128], strides = [1, 1]} : vector<8x384xf32> to vector<8x128xf32>
    %89 = vector.extract_strided_slice %87 {offsets = [0, 0], sizes = [8, 128], strides = [1, 1]} : vector<8x384xf32> to vector<8x128xf32>
    %90 = arith.addf %88, %89 : vector<8x128xf32>
    %91 = arith.negf %90 : vector<8x128xf32>
    %92 = math.exp %91 : vector<8x128xf32>
    %cst_33 = arith.constant 1.000000e+00 : f32
    %93 = vector.broadcast %cst_33 : f32 to vector<8x128xf32>
    %94 = arith.addf %93, %92 : vector<8x128xf32>
    %95 = arith.divf %93, %94 : vector<8x128xf32>
    %96 = vector.extract_strided_slice %84 {offsets = [0, 128], sizes = [8, 128], strides = [1, 1]} : vector<8x384xf32> to vector<8x128xf32>
    %97 = vector.extract_strided_slice %87 {offsets = [0, 128], sizes = [8, 128], strides = [1, 1]} : vector<8x384xf32> to vector<8x128xf32>
    %98 = arith.addf %96, %97 : vector<8x128xf32>
    %99 = arith.negf %98 : vector<8x128xf32>
    %100 = math.exp %99 : vector<8x128xf32>
    %cst_34 = arith.constant 1.000000e+00 : f32
    %101 = vector.broadcast %cst_34 : f32 to vector<8x128xf32>
    %102 = arith.addf %101, %100 : vector<8x128xf32>
    %103 = arith.divf %101, %102 : vector<8x128xf32>
    %104 = vector.extract_strided_slice %84 {offsets = [0, 256], sizes = [8, 128], strides = [1, 1]} : vector<8x384xf32> to vector<8x128xf32>
    %105 = vector.extract_strided_slice %87 {offsets = [0, 256], sizes = [8, 128], strides = [1, 1]} : vector<8x384xf32> to vector<8x128xf32>
    %106 = arith.mulf %95, %105 : vector<8x128xf32>
    %107 = arith.addf %104, %106 : vector<8x128xf32>
    %108 = math.tanh %107 : vector<8x128xf32>
    %cst_35 = arith.constant 1.000000e+00 : f32
    %109 = vector.broadcast %cst_35 : f32 to vector<8x128xf32>
    %110 = arith.subf %109, %103 : vector<8x128xf32>
    %111 = arith.mulf %110, %108 : vector<8x128xf32>
    %112 = arith.mulf %103, %78 : vector<8x128xf32>
    %113 = arith.addf %111, %112 : vector<8x128xf32>
    %114 = arith.index_cast %82 : i32 to index
    %c0_36 = arith.constant 0 : index
    %115 = vector.load %arg10[%114, %c0_36] : memref<64x128xf32, #tpu.memory_space<vmem>>, vector<8x128xf32>
    tpu.vector_store %arg10[%114, %c0_36], %113 {strides = array<i32>} : memref<64x128xf32, #tpu.memory_space<vmem>>, vector<8x128xf32>,
    %c3_i32 = arith.constant 3 : i32
    %c8_i32_37 = arith.constant 8 : i32
    %116 = arith.muli %c3_i32, %c8_i32_37 : i32
    %117 = tpu.assume_multiple %116, 8 : i32
    %118 = arith.index_cast %117 : i32 to index
    %c0_38 = arith.constant 0 : index
    %119 = vector.load %arg9[%118, %c0_38] : memref<64x384xf32, #tpu.memory_space<vmem>>, vector<8x384xf32>
    %c0_39 = arith.constant 0 : index
    %c0_40 = arith.constant 0 : index
    %120 = vector.load %arg4[%c0_39, %c0_40] : memref<128x384xf32, #tpu.memory_space<vmem>>, vector<128x384xf32>
    %cst_41 = arith.constant dense<0.000000e+00> : vector<8x384xf32>
    %121 = tpu.matmul %113, %120, %cst_41 {dimension_numbers = #tpu.dot_dimension_numbers<[1], [0], [0], [1], [0, 0, 1, 1], [], []>} : vector<8x128xf32>, vector<128x384xf32>, vector<8x384xf32> -> vector<8x384xf32>
    %122 = arith.addf %121, %9 : vector<8x384xf32>
    %123 = vector.extract_strided_slice %119 {offsets = [0, 0], sizes = [8, 128], strides = [1, 1]} : vector<8x384xf32> to vector<8x128xf32>
    %124 = vector.extract_strided_slice %122 {offsets = [0, 0], sizes = [8, 128], strides = [1, 1]} : vector<8x384xf32> to vector<8x128xf32>
    %125 = arith.addf %123, %124 : vector<8x128xf32>
    %126 = arith.negf %125 : vector<8x128xf32>
    %127 = math.exp %126 : vector<8x128xf32>
    %cst_42 = arith.constant 1.000000e+00 : f32
    %128 = vector.broadcast %cst_42 : f32 to vector<8x128xf32>
    %129 = arith.addf %128, %127 : vector<8x128xf32>
    %130 = arith.divf %128, %129 : vector<8x128xf32>
    %131 = vector.extract_strided_slice %119 {offsets = [0, 128], sizes = [8, 128], strides = [1, 1]} : vector<8x384xf32> to vector<8x128xf32>
    %132 = vector.extract_strided_slice %122 {offsets = [0, 128], sizes = [8, 128], strides = [1, 1]} : vector<8x384xf32> to vector<8x128xf32>
    %133 = arith.addf %131, %132 : vector<8x128xf32>
    %134 = arith.negf %133 : vector<8x128xf32>
    %135 = math.exp %134 : vector<8x128xf32>
    %cst_43 = arith.constant 1.000000e+00 : f32
    %136 = vector.broadcast %cst_43 : f32 to vector<8x128xf32>
    %137 = arith.addf %136, %135 : vector<8x128xf32>
    %138 = arith.divf %136, %137 : vector<8x128xf32>
    %139 = vector.extract_strided_slice %119 {offsets = [0, 256], sizes = [8, 128], strides = [1, 1]} : vector<8x384xf32> to vector<8x128xf32>
    %140 = vector.extract_strided_slice %122 {offsets = [0, 256], sizes = [8, 128], strides = [1, 1]} : vector<8x384xf32> to vector<8x128xf32>
    %141 = arith.mulf %130, %140 : vector<8x128xf32>
    %142 = arith.addf %139, %141 : vector<8x128xf32>
    %143 = math.tanh %142 : vector<8x128xf32>
    %cst_44 = arith.constant 1.000000e+00 : f32
    %144 = vector.broadcast %cst_44 : f32 to vector<8x128xf32>
    %145 = arith.subf %144, %138 : vector<8x128xf32>
    %146 = arith.mulf %145, %143 : vector<8x128xf32>
    %147 = arith.mulf %138, %113 : vector<8x128xf32>
    %148 = arith.addf %146, %147 : vector<8x128xf32>
    %149 = arith.index_cast %117 : i32 to index
    %c0_45 = arith.constant 0 : index
    %150 = vector.load %arg10[%149, %c0_45] : memref<64x128xf32, #tpu.memory_space<vmem>>, vector<8x128xf32>
    tpu.vector_store %arg10[%149, %c0_45], %148 {strides = array<i32>} : memref<64x128xf32, #tpu.memory_space<vmem>>, vector<8x128xf32>,
    %c4_i32 = arith.constant 4 : i32
    %c8_i32_46 = arith.constant 8 : i32
    %151 = arith.muli %c4_i32, %c8_i32_46 : i32
    %152 = tpu.assume_multiple %151, 8 : i32
    %153 = arith.index_cast %152 : i32 to index
    %c0_47 = arith.constant 0 : index
    %154 = vector.load %arg9[%153, %c0_47] : memref<64x384xf32, #tpu.memory_space<vmem>>, vector<8x384xf32>
    %c0_48 = arith.constant 0 : index
    %c0_49 = arith.constant 0 : index
    %155 = vector.load %arg4[%c0_48, %c0_49] : memref<128x384xf32, #tpu.memory_space<vmem>>, vector<128x384xf32>
    %cst_50 = arith.constant dense<0.000000e+00> : vector<8x384xf32>
    %156 = tpu.matmul %148, %155, %cst_50 {dimension_numbers = #tpu.dot_dimension_numbers<[1], [0], [0], [1], [0, 0, 1, 1], [], []>} : vector<8x128xf32>, vector<128x384xf32>, vector<8x384xf32> -> vector<8x384xf32>
    %157 = arith.addf %156, %9 : vector<8x384xf32>
    %158 = vector.extract_strided_slice %154 {offsets = [0, 0], sizes = [8, 128], strides = [1, 1]} : vector<8x384xf32> to vector<8x128xf32>
    %159 = vector.extract_strided_slice %157 {offsets = [0, 0], sizes = [8, 128], strides = [1, 1]} : vector<8x384xf32> to vector<8x128xf32>
    %160 = arith.addf %158, %159 : vector<8x128xf32>
    %161 = arith.negf %160 : vector<8x128xf32>
    %162 = math.exp %161 : vector<8x128xf32>
    %cst_51 = arith.constant 1.000000e+00 : f32
    %163 = vector.broadcast %cst_51 : f32 to vector<8x128xf32>
    %164 = arith.addf %163, %162 : vector<8x128xf32>
    %165 = arith.divf %163, %164 : vector<8x128xf32>
    %166 = vector.extract_strided_slice %154 {offsets = [0, 128], sizes = [8, 128], strides = [1, 1]} : vector<8x384xf32> to vector<8x128xf32>
    %167 = vector.extract_strided_slice %157 {offsets = [0, 128], sizes = [8, 128], strides = [1, 1]} : vector<8x384xf32> to vector<8x128xf32>
    %168 = arith.addf %166, %167 : vector<8x128xf32>
    %169 = arith.negf %168 : vector<8x128xf32>
    %170 = math.exp %169 : vector<8x128xf32>
    %cst_52 = arith.constant 1.000000e+00 : f32
    %171 = vector.broadcast %cst_52 : f32 to vector<8x128xf32>
    %172 = arith.addf %171, %170 : vector<8x128xf32>
    %173 = arith.divf %171, %172 : vector<8x128xf32>
    %174 = vector.extract_strided_slice %154 {offsets = [0, 256], sizes = [8, 128], strides = [1, 1]} : vector<8x384xf32> to vector<8x128xf32>
    %175 = vector.extract_strided_slice %157 {offsets = [0, 256], sizes = [8, 128], strides = [1, 1]} : vector<8x384xf32> to vector<8x128xf32>
    %176 = arith.mulf %165, %175 : vector<8x128xf32>
    %177 = arith.addf %174, %176 : vector<8x128xf32>
    %178 = math.tanh %177 : vector<8x128xf32>
    %cst_53 = arith.constant 1.000000e+00 : f32
    %179 = vector.broadcast %cst_53 : f32 to vector<8x128xf32>
    %180 = arith.subf %179, %173 : vector<8x128xf32>
    %181 = arith.mulf %180, %178 : vector<8x128xf32>
    %182 = arith.mulf %173, %148 : vector<8x128xf32>
    %183 = arith.addf %181, %182 : vector<8x128xf32>
    %184 = arith.index_cast %152 : i32 to index
    %c0_54 = arith.constant 0 : index
    %185 = vector.load %arg10[%184, %c0_54] : memref<64x128xf32, #tpu.memory_space<vmem>>, vector<8x128xf32>
    tpu.vector_store %arg10[%184, %c0_54], %183 {strides = array<i32>} : memref<64x128xf32, #tpu.memory_space<vmem>>, vector<8x128xf32>,
    %c5_i32 = arith.constant 5 : i32
    %c8_i32_55 = arith.constant 8 : i32
    %186 = arith.muli %c5_i32, %c8_i32_55 : i32
    %187 = tpu.assume_multiple %186, 8 : i32
    %188 = arith.index_cast %187 : i32 to index
    %c0_56 = arith.constant 0 : index
    %189 = vector.load %arg9[%188, %c0_56] : memref<64x384xf32, #tpu.memory_space<vmem>>, vector<8x384xf32>
    %c0_57 = arith.constant 0 : index
    %c0_58 = arith.constant 0 : index
    %190 = vector.load %arg4[%c0_57, %c0_58] : memref<128x384xf32, #tpu.memory_space<vmem>>, vector<128x384xf32>
    %cst_59 = arith.constant dense<0.000000e+00> : vector<8x384xf32>
    %191 = tpu.matmul %183, %190, %cst_59 {dimension_numbers = #tpu.dot_dimension_numbers<[1], [0], [0], [1], [0, 0, 1, 1], [], []>} : vector<8x128xf32>, vector<128x384xf32>, vector<8x384xf32> -> vector<8x384xf32>
    %192 = arith.addf %191, %9 : vector<8x384xf32>
    %193 = vector.extract_strided_slice %189 {offsets = [0, 0], sizes = [8, 128], strides = [1, 1]} : vector<8x384xf32> to vector<8x128xf32>
    %194 = vector.extract_strided_slice %192 {offsets = [0, 0], sizes = [8, 128], strides = [1, 1]} : vector<8x384xf32> to vector<8x128xf32>
    %195 = arith.addf %193, %194 : vector<8x128xf32>
    %196 = arith.negf %195 : vector<8x128xf32>
    %197 = math.exp %196 : vector<8x128xf32>
    %cst_60 = arith.constant 1.000000e+00 : f32
    %198 = vector.broadcast %cst_60 : f32 to vector<8x128xf32>
    %199 = arith.addf %198, %197 : vector<8x128xf32>
    %200 = arith.divf %198, %199 : vector<8x128xf32>
    %201 = vector.extract_strided_slice %189 {offsets = [0, 128], sizes = [8, 128], strides = [1, 1]} : vector<8x384xf32> to vector<8x128xf32>
    %202 = vector.extract_strided_slice %192 {offsets = [0, 128], sizes = [8, 128], strides = [1, 1]} : vector<8x384xf32> to vector<8x128xf32>
    %203 = arith.addf %201, %202 : vector<8x128xf32>
    %204 = arith.negf %203 : vector<8x128xf32>
    %205 = math.exp %204 : vector<8x128xf32>
    %cst_61 = arith.constant 1.000000e+00 : f32
    %206 = vector.broadcast %cst_61 : f32 to vector<8x128xf32>
    %207 = arith.addf %206, %205 : vector<8x128xf32>
    %208 = arith.divf %206, %207 : vector<8x128xf32>
    %209 = vector.extract_strided_slice %189 {offsets = [0, 256], sizes = [8, 128], strides = [1, 1]} : vector<8x384xf32> to vector<8x128xf32>
    %210 = vector.extract_strided_slice %192 {offsets = [0, 256], sizes = [8, 128], strides = [1, 1]} : vector<8x384xf32> to vector<8x128xf32>
    %211 = arith.mulf %200, %210 : vector<8x128xf32>
    %212 = arith.addf %209, %211 : vector<8x128xf32>
    %213 = math.tanh %212 : vector<8x128xf32>
    %cst_62 = arith.constant 1.000000e+00 : f32
    %214 = vector.broadcast %cst_62 : f32 to vector<8x128xf32>
    %215 = arith.subf %214, %208 : vector<8x128xf32>
    %216 = arith.mulf %215, %213 : vector<8x128xf32>
    %217 = arith.mulf %208, %183 : vector<8x128xf32>
    %218 = arith.addf %216, %217 : vector<8x128xf32>
    %219 = arith.index_cast %187 : i32 to index
    %c0_63 = arith.constant 0 : index
    %220 = vector.load %arg10[%219, %c0_63] : memref<64x128xf32, #tpu.memory_space<vmem>>, vector<8x128xf32>
    tpu.vector_store %arg10[%219, %c0_63], %218 {strides = array<i32>} : memref<64x128xf32, #tpu.memory_space<vmem>>, vector<8x128xf32>,
    %c6_i32 = arith.constant 6 : i32
    %c8_i32_64 = arith.constant 8 : i32
    %221 = arith.muli %c6_i32, %c8_i32_64 : i32
    %222 = tpu.assume_multiple %221, 8 : i32
    %223 = arith.index_cast %222 : i32 to index
    %c0_65 = arith.constant 0 : index
    %224 = vector.load %arg9[%223, %c0_65] : memref<64x384xf32, #tpu.memory_space<vmem>>, vector<8x384xf32>
    %c0_66 = arith.constant 0 : index
    %c0_67 = arith.constant 0 : index
    %225 = vector.load %arg4[%c0_66, %c0_67] : memref<128x384xf32, #tpu.memory_space<vmem>>, vector<128x384xf32>
    %cst_68 = arith.constant dense<0.000000e+00> : vector<8x384xf32>
    %226 = tpu.matmul %218, %225, %cst_68 {dimension_numbers = #tpu.dot_dimension_numbers<[1], [0], [0], [1], [0, 0, 1, 1], [], []>} : vector<8x128xf32>, vector<128x384xf32>, vector<8x384xf32> -> vector<8x384xf32>
    %227 = arith.addf %226, %9 : vector<8x384xf32>
    %228 = vector.extract_strided_slice %224 {offsets = [0, 0], sizes = [8, 128], strides = [1, 1]} : vector<8x384xf32> to vector<8x128xf32>
    %229 = vector.extract_strided_slice %227 {offsets = [0, 0], sizes = [8, 128], strides = [1, 1]} : vector<8x384xf32> to vector<8x128xf32>
    %230 = arith.addf %228, %229 : vector<8x128xf32>
    %231 = arith.negf %230 : vector<8x128xf32>
    %232 = math.exp %231 : vector<8x128xf32>
    %cst_69 = arith.constant 1.000000e+00 : f32
    %233 = vector.broadcast %cst_69 : f32 to vector<8x128xf32>
    %234 = arith.addf %233, %232 : vector<8x128xf32>
    %235 = arith.divf %233, %234 : vector<8x128xf32>
    %236 = vector.extract_strided_slice %224 {offsets = [0, 128], sizes = [8, 128], strides = [1, 1]} : vector<8x384xf32> to vector<8x128xf32>
    %237 = vector.extract_strided_slice %227 {offsets = [0, 128], sizes = [8, 128], strides = [1, 1]} : vector<8x384xf32> to vector<8x128xf32>
    %238 = arith.addf %236, %237 : vector<8x128xf32>
    %239 = arith.negf %238 : vector<8x128xf32>
    %240 = math.exp %239 : vector<8x128xf32>
    %cst_70 = arith.constant 1.000000e+00 : f32
    %241 = vector.broadcast %cst_70 : f32 to vector<8x128xf32>
    %242 = arith.addf %241, %240 : vector<8x128xf32>
    %243 = arith.divf %241, %242 : vector<8x128xf32>
    %244 = vector.extract_strided_slice %224 {offsets = [0, 256], sizes = [8, 128], strides = [1, 1]} : vector<8x384xf32> to vector<8x128xf32>
    %245 = vector.extract_strided_slice %227 {offsets = [0, 256], sizes = [8, 128], strides = [1, 1]} : vector<8x384xf32> to vector<8x128xf32>
    %246 = arith.mulf %235, %245 : vector<8x128xf32>
    %247 = arith.addf %244, %246 : vector<8x128xf32>
    %248 = math.tanh %247 : vector<8x128xf32>
    %cst_71 = arith.constant 1.000000e+00 : f32
    %249 = vector.broadcast %cst_71 : f32 to vector<8x128xf32>
    %250 = arith.subf %249, %243 : vector<8x128xf32>
    %251 = arith.mulf %250, %248 : vector<8x128xf32>
    %252 = arith.mulf %243, %218 : vector<8x128xf32>
    %253 = arith.addf %251, %252 : vector<8x128xf32>
    %254 = arith.index_cast %222 : i32 to index
    %c0_72 = arith.constant 0 : index
    %255 = vector.load %arg10[%254, %c0_72] : memref<64x128xf32, #tpu.memory_space<vmem>>, vector<8x128xf32>
    tpu.vector_store %arg10[%254, %c0_72], %253 {strides = array<i32>} : memref<64x128xf32, #tpu.memory_space<vmem>>, vector<8x128xf32>,
    %c7_i32 = arith.constant 7 : i32
    %c8_i32_73 = arith.constant 8 : i32
    %256 = arith.muli %c7_i32, %c8_i32_73 : i32
    %257 = tpu.assume_multiple %256, 8 : i32
    %258 = arith.index_cast %257 : i32 to index
    %c0_74 = arith.constant 0 : index
    %259 = vector.load %arg9[%258, %c0_74] : memref<64x384xf32, #tpu.memory_space<vmem>>, vector<8x384xf32>
    %c0_75 = arith.constant 0 : index
    %c0_76 = arith.constant 0 : index
    %260 = vector.load %arg4[%c0_75, %c0_76] : memref<128x384xf32, #tpu.memory_space<vmem>>, vector<128x384xf32>
    %cst_77 = arith.constant dense<0.000000e+00> : vector<8x384xf32>
    %261 = tpu.matmul %253, %260, %cst_77 {dimension_numbers = #tpu.dot_dimension_numbers<[1], [0], [0], [1], [0, 0, 1, 1], [], []>} : vector<8x128xf32>, vector<128x384xf32>, vector<8x384xf32> -> vector<8x384xf32>
    %262 = arith.addf %261, %9 : vector<8x384xf32>
    %263 = vector.extract_strided_slice %259 {offsets = [0, 0], sizes = [8, 128], strides = [1, 1]} : vector<8x384xf32> to vector<8x128xf32>
    %264 = vector.extract_strided_slice %262 {offsets = [0, 0], sizes = [8, 128], strides = [1, 1]} : vector<8x384xf32> to vector<8x128xf32>
    %265 = arith.addf %263, %264 : vector<8x128xf32>
    %266 = arith.negf %265 : vector<8x128xf32>
    %267 = math.exp %266 : vector<8x128xf32>
    %cst_78 = arith.constant 1.000000e+00 : f32
    %268 = vector.broadcast %cst_78 : f32 to vector<8x128xf32>
    %269 = arith.addf %268, %267 : vector<8x128xf32>
    %270 = arith.divf %268, %269 : vector<8x128xf32>
    %271 = vector.extract_strided_slice %259 {offsets = [0, 128], sizes = [8, 128], strides = [1, 1]} : vector<8x384xf32> to vector<8x128xf32>
    %272 = vector.extract_strided_slice %262 {offsets = [0, 128], sizes = [8, 128], strides = [1, 1]} : vector<8x384xf32> to vector<8x128xf32>
    %273 = arith.addf %271, %272 : vector<8x128xf32>
    %274 = arith.negf %273 : vector<8x128xf32>
    %275 = math.exp %274 : vector<8x128xf32>
    %cst_79 = arith.constant 1.000000e+00 : f32
    %276 = vector.broadcast %cst_79 : f32 to vector<8x128xf32>
    %277 = arith.addf %276, %275 : vector<8x128xf32>
    %278 = arith.divf %276, %277 : vector<8x128xf32>
    %279 = vector.extract_strided_slice %259 {offsets = [0, 256], sizes = [8, 128], strides = [1, 1]} : vector<8x384xf32> to vector<8x128xf32>
    %280 = vector.extract_strided_slice %262 {offsets = [0, 256], sizes = [8, 128], strides = [1, 1]} : vector<8x384xf32> to vector<8x128xf32>
    %281 = arith.mulf %270, %280 : vector<8x128xf32>
    %282 = arith.addf %279, %281 : vector<8x128xf32>
    %283 = math.tanh %282 : vector<8x128xf32>
    %cst_80 = arith.constant 1.000000e+00 : f32
    %284 = vector.broadcast %cst_80 : f32 to vector<8x128xf32>
    %285 = arith.subf %284, %278 : vector<8x128xf32>
    %286 = arith.mulf %285, %283 : vector<8x128xf32>
    %287 = arith.mulf %278, %253 : vector<8x128xf32>
    %288 = arith.addf %286, %287 : vector<8x128xf32>
    %289 = arith.index_cast %257 : i32 to index
    %c0_81 = arith.constant 0 : index
    %290 = vector.load %arg10[%289, %c0_81] : memref<64x128xf32, #tpu.memory_space<vmem>>, vector<8x128xf32>
    tpu.vector_store %arg10[%289, %c0_81], %288 {strides = array<i32>} : memref<64x128xf32, #tpu.memory_space<vmem>>, vector<8x128xf32>,
    %c8_i32_82 = arith.constant 8 : i32
    %c0_83 = arith.constant 0 : index
    %c0_84 = arith.constant 0 : index
    %291 = vector.load %arg10[%c0_83, %c0_84] : memref<64x128xf32, #tpu.memory_space<vmem>>, vector<64x128xf32>
    %c0_85 = arith.constant 0 : index
    %c0_86 = arith.constant 0 : index
    %292 = vector.load %arg6[%c0_85, %c0_86] : memref<128x128xf32, #tpu.memory_space<vmem>>, vector<128x128xf32>
    %cst_87 = arith.constant dense<0.000000e+00> : vector<64x128xf32>
    %293 = tpu.matmul %291, %292, %cst_87 {dimension_numbers = #tpu.dot_dimension_numbers<[1], [0], [0], [1], [0, 0, 1, 1], [], []>} : vector<64x128xf32>, vector<128x128xf32>, vector<64x128xf32> -> vector<64x128xf32>
    %c0_88 = arith.constant 0 : index
    %c0_89 = arith.constant 0 : index
    %294 = vector.load %arg7[%c0_88, %c0_89] : memref<1x128xf32, #tpu.memory_space<vmem>>, vector<1x128xf32>
    %295 = vector.broadcast %294 : vector<1x128xf32> to vector<64x128xf32>
    %296 = arith.addf %293, %295 : vector<64x128xf32>
    %c0_90 = arith.constant 0 : index
    %c0_91 = arith.constant 0 : index
    %297 = vector.load %arg8[%c0_90, %c0_91] : memref<64x128xf32, #tpu.memory_space<vmem>>, vector<64x128xf32>
    tpu.vector_store %arg8[%c0_90, %c0_91], %296 {strides = array<i32>} : memref<64x128xf32, #tpu.memory_space<vmem>>, vector<64x128xf32>,
    return
  }
}

</mosaic_0001>

<llo_original>
// kernel: tpu_custom_call.1
$region0: #{tpu_custom_call.1}
  #allocation0 [shape = 'u32[]', space=smem, size = 0x4, offset = 0x4, fixed_abs, tag = 'smem constant byte address 0x4 - core index']
  #allocation1 [shape = 'u32[144,128]{1,0:T(1,128)}', space=vmem, size = 0x12000, scoped, tag = 'internal scratch']
  #allocation2 [shape = 'f32[64,384]{1,0:T(8,128)}', space=vmem, size = 0x18000, scoped, tag = 'scratch operand']
  #allocation3 [shape = 'f32[64,128]{1,0:T(8,128)}', space=vmem, size = 0x8000, scoped, tag = 'scratch operand']
  %s0 = inlined_call_operand.vmem [shape: f32[64,1], index: 0, kind: input, shape index: {}]
  %s1 = inlined_call_operand.vmem [shape: f32[8,128], index: 1, kind: input, shape index: {}]
  %s2 = inlined_call_operand.vmem [shape: f32[1,384], index: 2, kind: input, shape index: {}]
  %s3 = inlined_call_operand.vmem [shape: f32[1,384], index: 3, kind: input, shape index: {}]
  %s4 = inlined_call_operand.hbm [shape: f32[128,384], index: 4, kind: input, shape index: {}]
  %s5 = inlined_call_operand.vmem [shape: f32[1,384], index: 5, kind: input, shape index: {}]
  %s6 = inlined_call_operand.hbm [shape: f32[128,128], index: 6, kind: input, shape index: {}]
  %s7 = inlined_call_operand.vmem [shape: f32[1,128], index: 7, kind: input, shape index: {}]
  %s8 = inlined_call_operand.hbm [shape: f32[64,128], index: 8, kind: output, shape index: {}]
  %s9 = sld [smem:[#allocation0]]
  $region50: #{tpu_custom_call.1} parent=0
    _
  %s11 = ssub.s32 1, %s9
  %s12 = scalar_select 0, %s11, %s9
  $region1: #{tpu_custom_call.1} parent=0
    #allocation4 [shape = 'u8[196608]{0}', space=vmem, size = 0x30000, scoped, tag = 'input window, operand 4, single buffered']
    #allocation5 [shape = 's32[1]{0}', space=sflag, size = 0x4, scoped, tag = 'scoped memory for tpu_custom_call.1']
    #allocation6 [shape = 's32[1]{0}', space=sflag, size = 0x4, scoped, tag = 'scoped memory for tpu_custom_call.1']
    #allocation7 [shape = 'u8[65536]{0}', space=vmem, size = 0x10000, scoped, tag = 'input window, operand 6, single buffered']
    #allocation8 [shape = 's32[1]{0}', space=sflag, size = 0x4, scoped, tag = 'scoped memory for tpu_custom_call.1']
    #allocation9 [shape = 'u8[32768]{0}', space=vmem, size = 0x8000, scoped, tag = 'output window, operand 0, single buffered']
    %13 = vsyncpa [#allocation5], 0
    %14 = vsyncpa [#allocation8], 0
    %15 = vsyncpa [#allocation6], 0
    // Predicated region
    $region2: #{tpu_custom_call.1} parent=1 // pred_check
      _
    $region3: #{tpu_custom_call.1} parent=1 // pred_check_branch
      %17 = sbr.rel (0) target = $region5
    $region4: #{tpu_custom_call.1} parent=1 // pred_region
      _
    $region5: #{tpu_custom_call.1} parent=1 // pred_fallthru
      _
    // Predicated region
    $region6: #{tpu_custom_call.1} parent=1 // pred_check
      _
    $region7: #{tpu_custom_call.1} parent=1 // pred_check_branch
      %19 = sbr.rel (0) target = $region9
    $region8: #{tpu_custom_call.1} parent=1 // pred_region
      _
    $region9: #{tpu_custom_call.1} parent=1 // pred_fallthru
      _
    // Predicated region
    $region10: #{tpu_custom_call.1} parent=1 // pred_check
      _
    $region11: #{tpu_custom_call.1} parent=1 // pred_check_branch
      %21 = sbr.rel (0) target = $region13
    $region12: #{tpu_custom_call.1} parent=1 // pred_region
      _
    $region13: #{tpu_custom_call.1} parent=1 // pred_fallthru
      _
    // Predicated region
    $region14: #{tpu_custom_call.1} parent=1 // pred_check
      _
    $region15: #{tpu_custom_call.1} parent=1 // pred_check_branch
      %23 = sbr.rel (0) target = $region17
    $region16: #{tpu_custom_call.1} parent=1 // pred_region
      _
    $region17: #{tpu_custom_call.1} parent=1 // pred_fallthru
      _
    // Predicated region
    $region18: #{tpu_custom_call.1} parent=1 // pred_check
      _
    $region19: #{tpu_custom_call.1} parent=1 // pred_check_branch
      %25 = sbr.rel (0) target = $region21
    $region20: #{tpu_custom_call.1} parent=1 // pred_region
      %s27 = ssub.s32 6144, 6144
      %28 = vsyncadd [#allocation5], %s27
      %s29 = sshll.u32 [#allocation4], 4
      %s30 = int_to_ptr.vmem [resolvable:$true] %s29
      %35 = dma.hbm_to_vmem [thread:$0]  %s4, 6144, %s30, [#allocation5], 384, 384, 24
    $region21: #{tpu_custom_call.1} parent=1 // pred_fallthru
      _
    // Predicated region
    $region22: #{tpu_custom_call.1} parent=1 // pred_check
      _
    $region23: #{tpu_custom_call.1} parent=1 // pred_check_branch
      %37 = sbr.rel (0) target = $region25
    $region24: #{tpu_custom_call.1} parent=1 // pred_region
      _
    $region25: #{tpu_custom_call.1} parent=1 // pred_fallthru
      _
    // Predicated region
    $region26: #{tpu_custom_call.1} parent=1 // pred_check
      _
    $region27: #{tpu_custom_call.1} parent=1 // pred_check_branch
      %39 = sbr.rel (0) target = $region29
    $region28: #{tpu_custom_call.1} parent=1 // pred_region
      %s41 = ssub.s32 2048, 2048
      %42 = vsyncadd [#allocation8], %s41
      %s43 = sshll.u32 [#allocation7], 4
      %s44 = int_to_ptr.vmem [resolvable:$true] %s43
      %49 = dma.hbm_to_vmem [thread:$0]  %s6, 2048, %s44, [#allocation8], 128, 128, 8
    $region29: #{tpu_custom_call.1} parent=1 // pred_fallthru
      _
    // Predicated region
    $region30: #{tpu_custom_call.1} parent=1 // pred_check
      _
    $region31: #{tpu_custom_call.1} parent=1 // pred_check_branch
      %51 = sbr.rel (0) target = $region33
    $region32: #{tpu_custom_call.1} parent=1 // pred_region
      _
    $region33: #{tpu_custom_call.1} parent=1 // pred_fallthru
      _
    // Predicated region
    $region34: #{tpu_custom_call.1} parent=1 // pred_check
      _
    $region35: #{tpu_custom_call.1} parent=1 // pred_check_branch
      %53 = sbr.rel (0) target = $region37
    $region36: #{tpu_custom_call.1} parent=1 // pred_region
      %54 = dma.done [#allocation5], 6144
    $region37: #{tpu_custom_call.1} parent=1 // pred_fallthru
      _
    // Predicated region
    $region38: #{tpu_custom_call.1} parent=1 // pred_check
      _
    $region39: #{tpu_custom_call.1} parent=1 // pred_check_branch
      %56 = sbr.rel (0) target = $region41
    $region40: #{tpu_custom_call.1} parent=1 // pred_region
      %57 = dma.done [#allocation8], 2048
    $region41: #{tpu_custom_call.1} parent=1 // pred_fallthru
      _
    %v58 = vld [vmem:[%s0] sm:$0xff]
    %v59 = vld [vmem:[%s0 + $0x8] sm:$0xff]
    %v60 = vld [vmem:[%s0 + $0x10] sm:$0xff]
    %v61 = vld [vmem:[%s0 + $0x18] sm:$0xff]
    %v62 = vld [vmem:[%s0 + $0x20] sm:$0xff]
    %v63 = vld [vmem:[%s0 + $0x28] sm:$0xff]
    %v64 = vld [vmem:[%s0 + $0x30] sm:$0xff]
    %v65 = vld [vmem:[%s0 + $0x38] sm:$0xff]
    %v66 = vld [vmem:[%s2] sm:$0x7]
    %v67 = vld [vmem:[%s3] sm:$0x7]
    %v69 = vlaneseq
    %v70 = vshrl.u32 %v69, 7
    %v71 = vsub.s32 0, %v70
    %v72 = vrot.slane %v67, %v71
    %v73 = vlaneseq
    %v74 = vshrl.u32 %v73, 7
    %v75 = vsub.s32 1, %v74
    %v76 = vrot.slane %v67, %v75
    %v77 = vlaneseq
    %v78 = vshrl.u32 %v77, 7
    %v79 = vsub.s32 2, %v78
    %v80 = vrot.slane %v67, %v79
    %v85 = vlaneseq
    %v86 = vshrl.u32 %v85, 7
    %v87 = vsub.s32 0, %v86
    %v88 = vrot.slane %v66, %v87
    %v89 = vlaneseq
    %v90 = vshrl.u32 %v89, 7
    %v91 = vsub.s32 1, %v90
    %v92 = vrot.slane %v66, %v91
    %v93 = vlaneseq
    %v94 = vshrl.u32 %v93, 7
    %v95 = vsub.s32 2, %v94
    %v96 = vrot.slane %v66, %v95
    %vm97 = vcmask 7168
    %v99 = vsel %vm97, %v58, 0
    %v102 = vsel %vm97, %v59, 0
    %v105 = vsel %vm97, %v60, 0
    %v108 = vsel %vm97, %v61, 0
    %v111 = vsel %vm97, %v62, 0
    %v114 = vsel %vm97, %v63, 0
    %v117 = vsel %vm97, %v64, 0
    %v120 = vsel %vm97, %v65, 0
    %vm122 = vcmask 1040384
    %v123 = vsel %vm122, %v88, 0
    %v125 = vsel %vm122, %v92, 0
    %v127 = vsel %vm122, %v96, 0
    %129 = vmatprep.subr.mxu0 0.0
    %130 = vmatpush1.msra.mxu0 0.0
    %131 = vmatprep.subr.mxu0 0.0
    %132 = vmatpush1.msra.mxu0 0.0
    %133 = vmatprep.subr.mxu0 0.0
    %134 = vmatpush1.msra.mxu0 0.0
    %135 = vmatprep.subr.mxu0 0.0
    %136 = vmatpush1.msra.mxu0 0.0
    %137 = vmatprep.subr.mxu0 0.0
    %138 = vmatpush1.msra.mxu0 0.0
    %139 = vmatprep.subr.mxu0 0.0
    %140 = vmatpush1.msra.mxu0 0.0
    %141 = vmatprep.subr.mxu0 0.0
    %142 = vmatpush1.msra.mxu0 0.0
    %143 = vmatprep.subr.mxu0 0.0
    %144 = vmatpush1.msra.mxu0 0.0
    %145 = vmatprep.subr.mxu0 0.0
    %146 = vmatpush1.msra.mxu0 0.0
    %147 = vmatprep.subr.mxu0 0.0
    %148 = vmatpush1.msra.mxu0 0.0
    %149 = vmatprep.subr.mxu0 0.0
    %150 = vmatpush1.msra.mxu0 0.0
    %151 = vmatprep.subr.mxu0 0.0
    %152 = vmatpush1.msra.mxu0 0.0
    %153 = vmatprep.subr.mxu0 0.0
    %154 = vmatpush1.msra.mxu0 0.0
    %155 = vmatprep.subr.mxu0 0.0
    %156 = vmatpush1.msra.mxu0 0.0
    %157 = vmatprep.subr.mxu0 0.0
    %158 = vmatpush1.msra.mxu0 0.0
    %159 = vmatprep.subr.mxu0 %v125
    %160 = vmatpush1.msra.mxu0 %v123
    %161 = vmatprep.subr.mxu0 0.0
    %162 = vmatpush2.msra.mxu0 0.0
    %163 = vmatprep.subr.mxu0 0.0
    %164 = vmatpush2.msra.mxu0 0.0
    %165 = vmatprep.subr.mxu0 0.0
    %166 = vmatpush2.msra.mxu0 0.0
    %167 = vmatprep.subr.mxu0 0.0
    %168 = vmatpush2.msra.mxu0 0.0
    %169 = vmatprep.subr.mxu0 0.0
    %170 = vmatpush2.msra.mxu0 0.0
    %171 = vmatprep.subr.mxu0 0.0
    %172 = vmatpush2.msra.mxu0 0.0
    %173 = vmatprep.subr.mxu0 0.0
    %174 = vmatpush2.msra.mxu0 0.0
    %175 = vmatprep.subr.mxu0 0.0
    %176 = vmatpush2.msra.mxu0 0.0
    %177 = vmatprep.subr.mxu0 0.0
    %178 = vmatpush2.msra.mxu0 0.0
    %179 = vmatprep.subr.mxu0 0.0
    %180 = vmatpush2.msra.mxu0 0.0
    %181 = vmatprep.subr.mxu0 0.0
    %182 = vmatpush2.msra.mxu0 0.0
    %183 = vmatprep.subr.mxu0 0.0
    %184 = vmatpush2.msra.mxu0 0.0
    %185 = vmatprep.subr.mxu0 0.0
    %186 = vmatpush2.msra.mxu0 0.0
    %187 = vmatprep.subr.mxu0 0.0
    %188 = vmatpush2.msra.mxu0 0.0
    %189 = vmatprep.subr.mxu0 0.0
    %190 = vmatpush2.msra.mxu0 0.0
    %191 = vmatprep.subr.mxu0 0.0
    %192 = vmatpush2.msra.mxu0 0.0
    %193 = vmatprep.mubr.f32.mxu0 0.0
    %194 = vmatmul.mubr.f32.gmra.mxu0 %v99
    %v195 = vpop.f32.mrf.mxu0
    %v196 = vadd.f32 %v72, %v195
    %v197 = vpop.f32.mrf.mxu0
    %v198 = vadd.f32 %v76, %v197
    %199 = vmatprep.mubr.f32.mxu0 0.0
    %200 = vmatmul.mubr.f32.gmra.mxu0 %v102
    %v201 = vpop.f32.mrf.mxu0
    %v202 = vadd.f32 %v72, %v201
    %v203 = vpop.f32.mrf.mxu0
    %v204 = vadd.f32 %v76, %v203
    %205 = vmatprep.mubr.f32.mxu0 0.0
    %206 = vmatmul.mubr.f32.gmra.mxu0 %v105
    %v207 = vpop.f32.mrf.mxu0
    %v208 = vadd.f32 %v72, %v207
    %v209 = vpop.f32.mrf.mxu0
    %v210 = vadd.f32 %v76, %v209
    %211 = vmatprep.mubr.f32.mxu0 0.0
    %212 = vmatmul.mubr.f32.gmra.mxu0 %v108
    %v213 = vpop.f32.mrf.mxu0
    %v214 = vadd.f32 %v72, %v213
    %v215 = vpop.f32.mrf.mxu0
    %v216 = vadd.f32 %v76, %v215
    %217 = vmatprep.mubr.f32.mxu0 0.0
    %218 = vmatmul.mubr.f32.gmra.mxu0 %v111
    %v219 = vpop.f32.mrf.mxu0
    %v220 = vadd.f32 %v72, %v219
    %v221 = vpop.f32.mrf.mxu0
    %v222 = vadd.f32 %v76, %v221
    %223 = vmatprep.mubr.f32.mxu0 0.0
    %224 = vmatmul.mubr.f32.gmra.mxu0 %v114
    %v225 = vpop.f32.mrf.mxu0
    %v226 = vadd.f32 %v72, %v225
    %v227 = vpop.f32.mrf.mxu0
    %v228 = vadd.f32 %v76, %v227
    %229 = vmatprep.mubr.f32.mxu0 0.0
    %230 = vmatmul.mubr.f32.gmra.mxu0 %v117
    %v231 = vpop.f32.mrf.mxu0
    %v232 = vadd.f32 %v72, %v231
    %v233 = vpop.f32.mrf.mxu0
    %v234 = vadd.f32 %v76, %v233
    %235 = vmatprep.mubr.f32.mxu0 0.0
    %236 = vmatmul.mubr.f32.gmra.mxu0 %v120
    %v237 = vpop.f32.mrf.mxu0
    %v238 = vadd.f32 %v72, %v237
    %v239 = vpop.f32.mrf.mxu0
    %v240 = vadd.f32 %v76, %v239
    %241 = vdwg.mxu0
    %242 = vmatprep.subr.mxu0 0.0
    %243 = vmatpush1.msra.mxu0 0.0
    %244 = vmatprep.subr.mxu0 0.0
    %245 = vmatpush1.msra.mxu0 0.0
    %246 = vmatprep.subr.mxu0 0.0
    %247 = vmatpush1.msra.mxu0 0.0
    %248 = vmatprep.subr.mxu0 0.0
    %249 = vmatpush1.msra.mxu0 0.0
    %250 = vmatprep.subr.mxu0 0.0
    %251 = vmatpush1.msra.mxu0 0.0
    %252 = vmatprep.subr.mxu0 0.0
    %253 = vmatpush1.msra.mxu0 0.0
    %254 = vmatprep.subr.mxu0 0.0
    %255 = vmatpush1.msra.mxu0 0.0
    %256 = vmatprep.subr.mxu0 0.0
    %257 = vmatpush1.msra.mxu0 0.0
    %258 = vmatprep.subr.mxu0 0.0
    %259 = vmatpush1.msra.mxu0 0.0
    %260 = vmatprep.subr.mxu0 0.0
    %261 = vmatpush1.msra.mxu0 0.0
    %262 = vmatprep.subr.mxu0 0.0
    %263 = vmatpush1.msra.mxu0 0.0
    %264 = vmatprep.subr.mxu0 0.0
    %265 = vmatpush1.msra.mxu0 0.0
    %266 = vmatprep.subr.mxu0 0.0
    %267 = vmatpush1.msra.mxu0 0.0
    %268 = vmatprep.subr.mxu0 0.0
    %269 = vmatpush1.msra.mxu0 0.0
    %270 = vmatprep.subr.mxu0 0.0
    %271 = vmatpush1.msra.mxu0 0.0
    %272 = vmatprep.subr.mxu0 0.0
    %273 = vmatpush1.msra.mxu0 %v127
    %274 = vmatprep.subr.mxu0 0.0
    %275 = vmatpush2.msra.mxu0 0.0
    %276 = vmatprep.subr.mxu0 0.0
    %277 = vmatpush2.msra.mxu0 0.0
    %278 = vmatprep.subr.mxu0 0.0
    %279 = vmatpush2.msra.mxu0 0.0
    %280 = vmatprep.subr.mxu0 0.0
    %281 = vmatpush2.msra.mxu0 0.0
    %282 = vmatprep.subr.mxu0 0.0
    %283 = vmatpush2.msra.mxu0 0.0
    %284 = vmatprep.subr.mxu0 0.0
    %285 = vmatpush2.msra.mxu0 0.0
    %286 = vmatprep.subr.mxu0 0.0
    %287 = vmatpush2.msra.mxu0 0.0
    %288 = vmatprep.subr.mxu0 0.0
    %289 = vmatpush2.msra.mxu0 0.0
    %290 = vmatprep.subr.mxu0 0.0
    %291 = vmatpush2.msra.mxu0 0.0
    %292 = vmatprep.subr.mxu0 0.0
    %293 = vmatpush2.msra.mxu0 0.0
    %294 = vmatprep.subr.mxu0 0.0
    %295 = vmatpush2.msra.mxu0 0.0
    %296 = vmatprep.subr.mxu0 0.0
    %297 = vmatpush2.msra.mxu0 0.0
    %298 = vmatprep.subr.mxu0 0.0
    %299 = vmatpush2.msra.mxu0 0.0
    %300 = vmatprep.subr.mxu0 0.0
    %301 = vmatpush2.msra.mxu0 0.0
    %302 = vmatprep.subr.mxu0 0.0
    %303 = vmatpush2.msra.mxu0 0.0
    %304 = vmatprep.subr.mxu0 0.0
    %305 = vmatpush2.msra.mxu0 0.0
    %306 = vmatprep.mubr.f32.mxu0 0.0
    %307 = vmatmul.mubr.f32.gmra.mxu0 %v99
    %v308 = vpop.f32.mrf.mxu0
    %v309 = vadd.f32 %v80, %v308
    %v310 = vpop.f32.mrf.mxu0
    %311 = vmatprep.mubr.f32.mxu0 0.0
    %312 = vmatmul.mubr.f32.gmra.mxu0 %v102
    %v313 = vpop.f32.mrf.mxu0
    %v314 = vadd.f32 %v80, %v313
    %v315 = vpop.f32.mrf.mxu0
    %316 = vmatprep.mubr.f32.mxu0 0.0
    %317 = vmatmul.mubr.f32.gmra.mxu0 %v105
    %v318 = vpop.f32.mrf.mxu0
    %v319 = vadd.f32 %v80, %v318
    %v320 = vpop.f32.mrf.mxu0
    %321 = vmatprep.mubr.f32.mxu0 0.0
    %322 = vmatmul.mubr.f32.gmra.mxu0 %v108
    %v323 = vpop.f32.mrf.mxu0
    %v324 = vadd.f32 %v80, %v323
    %v325 = vpop.f32.mrf.mxu0
    %326 = vmatprep.mubr.f32.mxu0 0.0
    %327 = vmatmul.mubr.f32.gmra.mxu0 %v111
    %v328 = vpop.f32.mrf.mxu0
    %v329 = vadd.f32 %v80, %v328
    %v330 = vpop.f32.mrf.mxu0
    %331 = vmatprep.mubr.f32.mxu0 0.0
    %332 = vmatmul.mubr.f32.gmra.mxu0 %v114
    %v333 = vpop.f32.mrf.mxu0
    %v334 = vadd.f32 %v80, %v333
    %v335 = vpop.f32.mrf.mxu0
    %336 = vmatprep.mubr.f32.mxu0 0.0
    %337 = vmatmul.mubr.f32.gmra.mxu0 %v117
    %v338 = vpop.f32.mrf.mxu0
    %v339 = vadd.f32 %v80, %v338
    %v340 = vpop.f32.mrf.mxu0
    %341 = vmatprep.mubr.f32.mxu0 0.0
    %342 = vmatmul.mubr.f32.gmra.mxu0 %v120
    %v343 = vpop.f32.mrf.mxu0
    %v344 = vadd.f32 %v80, %v343
    %v345 = vpop.f32.mrf.mxu0
    %346 = vdwg.mxu0
    %347 = vst [vmem:[#allocation2] sm:$0xff] %v196
    %348 = vst [vmem:[#allocation2 + $0x8] sm:$0xff] %v198
    %349 = vst [vmem:[#allocation2 + $0x10] sm:$0xff] %v309
    %350 = vst [vmem:[#allocation2 + $0x18] sm:$0xff] %v202
    %351 = vst [vmem:[#allocation2 + $0x20] sm:$0xff] %v204
    %352 = vst [vmem:[#allocation2 + $0x28] sm:$0xff] %v314
    %353 = vst [vmem:[#allocation2 + $0x30] sm:$0xff] %v208
    %354 = vst [vmem:[#allocation2 + $0x38] sm:$0xff] %v210
    %355 = vst [vmem:[#allocation2 + $0x40] sm:$0xff] %v319
    %356 = vst [vmem:[#allocation2 + $0x48] sm:$0xff] %v214
    %357 = vst [vmem:[#allocation2 + $0x50] sm:$0xff] %v216
    %358 = vst [vmem:[#allocation2 + $0x58] sm:$0xff] %v324
    %359 = vst [vmem:[#allocation2 + $0x60] sm:$0xff] %v220
    %360 = vst [vmem:[#allocation2 + $0x68] sm:$0xff] %v222
    %361 = vst [vmem:[#allocation2 + $0x70] sm:$0xff] %v329
    %362 = vst [vmem:[#allocation2 + $0x78] sm:$0xff] %v226
    %363 = vst [vmem:[#allocation2 + $0x80] sm:$0xff] %v228
    %364 = vst [vmem:[#allocation2 + $0x88] sm:$0xff] %v334
    %365 = vst [vmem:[#allocation2 + $0x90] sm:$0xff] %v232
    %366 = vst [vmem:[#allocation2 + $0x98] sm:$0xff] %v234
    %367 = vst [vmem:[#allocation2 + $0xa0] sm:$0xff] %v339
    %368 = vst [vmem:[#allocation2 + $0xa8] sm:$0xff] %v238
    %369 = vst [vmem:[#allocation2 + $0xb0] sm:$0xff] %v240
    %370 = vst [vmem:[#allocation2 + $0xb8] sm:$0xff] %v344
    %v371 = vld [vmem:[%s5] sm:$0x7]
    %v373 = vlaneseq
    %v374 = vshrl.u32 %v373, 7
    %v375 = vsub.s32 0, %v374
    %v376 = vrot.slane %v371, %v375
    %v377 = vlaneseq
    %v378 = vshrl.u32 %v377, 7
    %v379 = vsub.s32 1, %v378
    %v380 = vrot.slane %v371, %v379
    %v381 = vlaneseq
    %v382 = vshrl.u32 %v381, 7
    %v383 = vsub.s32 2, %v382
    %v384 = vrot.slane %v371, %v383
    %v388 = vld [vmem:[%s1] sm:$0xff]
    %s389 = smul.u32 0, 3
    %s390 = smul.addr %s389, 8
    %s391 = scalar_lea.vmem [#allocation2], %s390
    %v392 = vld [vmem:[%s391] sm:$0xff]
    %v393 = vld [vmem:[%s391 + $0x8] sm:$0xff]
    %v394 = vld [vmem:[%s391 + $0x10] sm:$0xff]
    %v395 = vld [vmem:[#allocation4] sm:$0xff]
    %v396 = vld [vmem:[#allocation4 + $0x8] sm:$0xff]
    %v397 = vld [vmem:[#allocation4 + $0x10] sm:$0xff]
    %v398 = vld [vmem:[#allocation4 + $0x18] sm:$0xff]
    %v399 = vld [vmem:[#allocation4 + $0x20] sm:$0xff]
    %v400 = vld [vmem:[#allocation4 + $0x28] sm:$0xff]
    %v401 = vld [vmem:[#allocation4 + $0x30] sm:$0xff]
    %v402 = vld [vmem:[#allocation4 + $0x38] sm:$0xff]
    %v403 = vld [vmem:[#allocation4 + $0x40] sm:$0xff]
    %v404 = vld [vmem:[#allocation4 + $0x48] sm:$0xff]
    %v405 = vld [vmem:[#allocation4 + $0x50] sm:$0xff]
    %v406 = vld [vmem:[#allocation4 + $0x58] sm:$0xff]
    %v407 = vld [vmem:[#allocation4 + $0x60] sm:$0xff]
    %v408 = vld [vmem:[#allocation4 + $0x68] sm:$0xff]
    %v409 = vld [vmem:[#allocation4 + $0x70] sm:$0xff]
    %v410 = vld [vmem:[#allocation4 + $0x78] sm:$0xff]
    %v411 = vld [vmem:[#allocation4 + $0x80] sm:$0xff]
    %v412 = vld [vmem:[#allocation4 + $0x88] sm:$0xff]
    %v413 = vld [vmem:[#allocation4 + $0x90] sm:$0xff]
    %v414 = vld [vmem:[#allocation4 + $0x98] sm:$0xff]
    %v415 = vld [vmem:[#allocation4 + $0xa0] sm:$0xff]
    %v416 = vld [vmem:[#allocation4 + $0xa8] sm:$0xff]
    %v417 = vld [vmem:[#allocation4 + $0xb0] sm:$0xff]
    %v418 = vld [vmem:[#allocation4 + $0xb8] sm:$0xff]
    %v419 = vld [vmem:[#allocation4 + $0xc0] sm:$0xff]
    %v420 = vld [vmem:[#allocation4 + $0xc8] sm:$0xff]
    %v421 = vld [vmem:[#allocation4 + $0xd0] sm:$0xff]
    %v422 = vld [vmem:[#allocation4 + $0xd8] sm:$0xff]
    %v423 = vld [vmem:[#allocation4 + $0xe0] sm:$0xff]
    %v424 = vld [vmem:[#allocation4 + $0xe8] sm:$0xff]
    %v425 = vld [vmem:[#allocation4 + $0xf0] sm:$0xff]
    %v426 = vld [vmem:[#allocation4 + $0xf8] sm:$0xff]
    %v427 = vld [vmem:[#allocation4 + $0x100] sm:$0xff]
    %v428 = vld [vmem:[#allocation4 + $0x108] sm:$0xff]
    %v429 = vld [vmem:[#allocation4 + $0x110] sm:$0xff]
    %v430 = vld [vmem:[#allocation4 + $0x118] sm:$0xff]
    %v431 = vld [vmem:[#allocation4 + $0x120] sm:$0xff]
    %v432 = vld [vmem:[#allocation4 + $0x128] sm:$0xff]
    %v433 = vld [vmem:[#allocation4 + $0x130] sm:$0xff]
    %v434 = vld [vmem:[#allocation4 + $0x138] sm:$0xff]
    %v435 = vld [vmem:[#allocation4 + $0x140] sm:$0xff]
    %v436 = vld [vmem:[#allocation4 + $0x148] sm:$0xff]
    %v437 = vld [vmem:[#allocation4 + $0x150] sm:$0xff]
    %v438 = vld [vmem:[#allocation4 + $0x158] sm:$0xff]
    %v439 = vld [vmem:[#allocation4 + $0x160] sm:$0xff]
    %v440 = vld [vmem:[#allocation4 + $0x168] sm:$0xff]
    %v441 = vld [vmem:[#allocation4 + $0x170] sm:$0xff]
    %v442 = vld [vmem:[#allocation4 + $0x178] sm:$0xff]
    %443 = vmatprep.subr.mxu0 %v441
    %444 = vmatpush1.msra.mxu0 %v440
    %445 = vmatprep.subr.mxu0 %v438
    %446 = vmatpush1.msra.mxu0 %v437
    %447 = vmatprep.subr.mxu0 %v435
    %448 = vmatpush1.msra.mxu0 %v434
    %449 = vmatprep.subr.mxu0 %v432
    %450 = vmatpush1.msra.mxu0 %v431
    %451 = vmatprep.subr.mxu0 %v429
    %452 = vmatpush1.msra.mxu0 %v428
    %453 = vmatprep.subr.mxu0 %v426
    %454 = vmatpush1.msra.mxu0 %v425
    %455 = vmatprep.subr.mxu0 %v423
    %456 = vmatpush1.msra.mxu0 %v422
    %457 = vmatprep.subr.mxu0 %v420
    %458 = vmatpush1.msra.mxu0 %v419
    %459 = vmatprep.subr.mxu0 %v417
    %460 = vmatpush1.msra.mxu0 %v416
    %461 = vmatprep.subr.mxu0 %v414
    %462 = vmatpush1.msra.mxu0 %v413
    %463 = vmatprep.subr.mxu0 %v411
    %464 = vmatpush1.msra.mxu0 %v410
    %465 = vmatprep.subr.mxu0 %v408
    %466 = vmatpush1.msra.mxu0 %v407
    %467 = vmatprep.subr.mxu0 %v405
    %468 = vmatpush1.msra.mxu0 %v404
    %469 = vmatprep.subr.mxu0 %v402
    %470 = vmatpush1.msra.mxu0 %v401
    %471 = vmatprep.subr.mxu0 %v399
    %472 = vmatpush1.msra.mxu0 %v398
    %473 = vmatprep.subr.mxu0 %v396
    %474 = vmatpush1.msra.mxu0 %v395
    %475 = vmatprep.subr.mxu0 0.0
    %476 = vmatpush2.msra.mxu0 0.0
    %477 = vmatprep.subr.mxu0 0.0
    %478 = vmatpush2.msra.mxu0 0.0
    %479 = vmatprep.subr.mxu0 0.0
    %480 = vmatpush2.msra.mxu0 0.0
    %481 = vmatprep.subr.mxu0 0.0
    %482 = vmatpush2.msra.mxu0 0.0
    %483 = vmatprep.subr.mxu0 0.0
    %484 = vmatpush2.msra.mxu0 0.0
    %485 = vmatprep.subr.mxu0 0.0
    %486 = vmatpush2.msra.mxu0 0.0
    %487 = vmatprep.subr.mxu0 0.0
    %488 = vmatpush2.msra.mxu0 0.0
    %489 = vmatprep.subr.mxu0 0.0
    %490 = vmatpush2.msra.mxu0 0.0
    %491 = vmatprep.subr.mxu0 0.0
    %492 = vmatpush2.msra.mxu0 0.0
    %493 = vmatprep.subr.mxu0 0.0
    %494 = vmatpush2.msra.mxu0 0.0
    %495 = vmatprep.subr.mxu0 0.0
    %496 = vmatpush2.msra.mxu0 0.0
    %497 = vmatprep.subr.mxu0 0.0
    %498 = vmatpush2.msra.mxu0 0.0
    %499 = vmatprep.subr.mxu0 0.0
    %500 = vmatpush2.msra.mxu0 0.0
    %501 = vmatprep.subr.mxu0 0.0
    %502 = vmatpush2.msra.mxu0 0.0
    %503 = vmatprep.subr.mxu0 0.0
    %504 = vmatpush2.msra.mxu0 0.0
    %505 = vmatprep.subr.mxu0 0.0
    %506 = vmatpush2.msra.mxu0 0.0
    %507 = vmatprep.mubr.f32.mxu0 0.0
    %508 = vmatmul.mubr.f32.gmra.mxu0 %v388
    %v509 = vpop.f32.mrf.mxu0
    %v510 = vadd.f32 %v376, %v509
    %v511 = vpop.f32.mrf.mxu0
    %v512 = vadd.f32 %v380, %v511
    %513 = vdwg.mxu0
    %514 = vmatprep.subr.mxu0 0.0
    %515 = vmatpush1.msra.mxu0 %v442
    %516 = vmatprep.subr.mxu0 0.0
    %517 = vmatpush1.msra.mxu0 %v439
    %518 = vmatprep.subr.mxu0 0.0
    %519 = vmatpush1.msra.mxu0 %v436
    %520 = vmatprep.subr.mxu0 0.0
    %521 = vmatpush1.msra.mxu0 %v433
    %522 = vmatprep.subr.mxu0 0.0
    %523 = vmatpush1.msra.mxu0 %v430
    %524 = vmatprep.subr.mxu0 0.0
    %525 = vmatpush1.msra.mxu0 %v427
    %526 = vmatprep.subr.mxu0 0.0
    %527 = vmatpush1.msra.mxu0 %v424
    %528 = vmatprep.subr.mxu0 0.0
    %529 = vmatpush1.msra.mxu0 %v421
    %530 = vmatprep.subr.mxu0 0.0
    %531 = vmatpush1.msra.mxu0 %v418
    %532 = vmatprep.subr.mxu0 0.0
    %533 = vmatpush1.msra.mxu0 %v415
    %534 = vmatprep.subr.mxu0 0.0
    %535 = vmatpush1.msra.mxu0 %v412
    %536 = vmatprep.subr.mxu0 0.0
    %537 = vmatpush1.msra.mxu0 %v409
    %538 = vmatprep.subr.mxu0 0.0
    %539 = vmatpush1.msra.mxu0 %v406
    %540 = vmatprep.subr.mxu0 0.0
    %541 = vmatpush1.msra.mxu0 %v403
    %542 = vmatprep.subr.mxu0 0.0
    %543 = vmatpush1.msra.mxu0 %v400
    %544 = vmatprep.subr.mxu0 0.0
    %545 = vmatpush1.msra.mxu0 %v397
    %546 = vmatprep.subr.mxu0 0.0
    %547 = vmatpush2.msra.mxu0 0.0
    %548 = vmatprep.subr.mxu0 0.0
    %549 = vmatpush2.msra.mxu0 0.0
    %550 = vmatprep.subr.mxu0 0.0
    %551 = vmatpush2.msra.mxu0 0.0
    %552 = vmatprep.subr.mxu0 0.0
    %553 = vmatpush2.msra.mxu0 0.0
    %554 = vmatprep.subr.mxu0 0.0
    %555 = vmatpush2.msra.mxu0 0.0
    %556 = vmatprep.subr.mxu0 0.0
    %557 = vmatpush2.msra.mxu0 0.0
    %558 = vmatprep.subr.mxu0 0.0
    %559 = vmatpush2.msra.mxu0 0.0
    %560 = vmatprep.subr.mxu0 0.0
    %561 = vmatpush2.msra.mxu0 0.0
    %562 = vmatprep.subr.mxu0 0.0
    %563 = vmatpush2.msra.mxu0 0.0
    %564 = vmatprep.subr.mxu0 0.0
    %565 = vmatpush2.msra.mxu0 0.0
    %566 = vmatprep.subr.mxu0 0.0
    %567 = vmatpush2.msra.mxu0 0.0
    %568 = vmatprep.subr.mxu0 0.0
    %569 = vmatpush2.msra.mxu0 0.0
    %570 = vmatprep.subr.mxu0 0.0
    %571 = vmatpush2.msra.mxu0 0.0
    %572 = vmatprep.subr.mxu0 0.0
    %573 = vmatpush2.msra.mxu0 0.0
    %574 = vmatprep.subr.mxu0 0.0
    %575 = vmatpush2.msra.mxu0 0.0
    %576 = vmatprep.subr.mxu0 0.0
    %577 = vmatpush2.msra.mxu0 0.0
    %578 = vmatprep.mubr.f32.mxu0 0.0
    %579 = vmatmul.mubr.f32.gmra.mxu0 %v388
    %v580 = vpop.f32.mrf.mxu0
    %v581 = vadd.f32 %v384, %v580
    %v582 = vpop.f32.mrf.mxu0
    %583 = vdwg.mxu0
    %v584 = vadd.f32 %v392, %v510
    %v585 = vxor.u32 %v584, 2147483648
    %v586 = vmul.f32 %v585, 1.442695
    %v587 = vpow.pop %v586
    %v588 = vadd.f32 %v587, 1.0
    %v589 = vrcp.pop %v588
    %v590 = vmul.f32 1.0, %v589
    %v591 = vadd.f32 %v393, %v512
    %v592 = vxor.u32 %v591, 2147483648
    %v593 = vmul.f32 %v592, 1.442695
    %v594 = vpow.pop %v593
    %v595 = vadd.f32 %v594, 1.0
    %v596 = vrcp.pop %v595
    %v597 = vmul.f32 1.0, %v596
    %v598 = vmul.f32 %v590, %v581
    %v599 = vadd.f32 %v394, %v598
    %v600 = vtanh.pop %v599
    %v601 = vsub.f32 1.0, %v597
    %v602 = vmul.f32 %v601, %v600
    %v603 = vmul.f32 %v597, %v388
    %v604 = vadd.f32 %v602, %v603
    %605 = vst [vmem:[#allocation3] sm:$0xff] %v604
    %s606 = smul.u32 1, 3
    %s607 = smul.addr %s606, 8
    %s608 = scalar_lea.vmem [#allocation2], %s607
    %v609 = vld [vmem:[%s608] sm:$0xff]
    %v610 = vld [vmem:[%s608 + $0x8] sm:$0xff]
    %v611 = vld [vmem:[%s608 + $0x10] sm:$0xff]
    %v612 = vld [vmem:[#allocation4] sm:$0xff]
    %v613 = vld [vmem:[#allocation4 + $0x8] sm:$0xff]
    %v614 = vld [vmem:[#allocation4 + $0x10] sm:$0xff]
    %v615 = vld [vmem:[#allocation4 + $0x18] sm:$0xff]
    %v616 = vld [vmem:[#allocation4 + $0x20] sm:$0xff]
    %v617 = vld [vmem:[#allocation4 + $0x28] sm:$0xff]
    %v618 = vld [vmem:[#allocation4 + $0x30] sm:$0xff]
    %v619 = vld [vmem:[#allocation4 + $0x38] sm:$0xff]
    %v620 = vld [vmem:[#allocation4 + $0x40] sm:$0xff]
    %v621 = vld [vmem:[#allocation4 + $0x48] sm:$0xff]
    %v622 = vld [vmem:[#allocation4 + $0x50] sm:$0xff]
    %v623 = vld [vmem:[#allocation4 + $0x58] sm:$0xff]
    %v624 = vld [vmem:[#allocation4 + $0x60] sm:$0xff]
    %v625 = vld [vmem:[#allocation4 + $0x68] sm:$0xff]
    %v626 = vld [vmem:[#allocation4 + $0x70] sm:$0xff]
    %v627 = vld [vmem:[#allocation4 + $0x78] sm:$0xff]
    %v628 = vld [vmem:[#allocation4 + $0x80] sm:$0xff]
    %v629 = vld [vmem:[#allocation4 + $0x88] sm:$0xff]
    %v630 = vld [vmem:[#allocation4 + $0x90] sm:$0xff]
    %v631 = vld [vmem:[#allocation4 + $0x98] sm:$0xff]
    %v632 = vld [vmem:[#allocation4 + $0xa0] sm:$0xff]
    %v633 = vld [vmem:[#allocation4 + $0xa8] sm:$0xff]
    %v634 = vld [vmem:[#allocation4 + $0xb0] sm:$0xff]
    %v635 = vld [vmem:[#allocation4 + $0xb8] sm:$0xff]
    %v636 = vld [vmem:[#allocation4 + $0xc0] sm:$0xff]
    %v637 = vld [vmem:[#allocation4 + $0xc8] sm:$0xff]
    %v638 = vld [vmem:[#allocation4 + $0xd0] sm:$0xff]
    %v639 = vld [vmem:[#allocation4 + $0xd8] sm:$0xff]
    %v640 = vld [vmem:[#allocation4 + $0xe0] sm:$0xff]
    %v641 = vld [vmem:[#allocation4 + $0xe8] sm:$0xff]
    %v642 = vld [vmem:[#allocation4 + $0xf0] sm:$0xff]
    %v643 = vld [vmem:[#allocation4 + $0xf8] sm:$0xff]
    %v644 = vld [vmem:[#allocation4 + $0x100] sm:$0xff]
    %v645 = vld [vmem:[#allocation4 + $0x108] sm:$0xff]
    %v646 = vld [vmem:[#allocation4 + $0x110] sm:$0xff]
    %v647 = vld [vmem:[#allocation4 + $0x118] sm:$0xff]
    %v648 = vld [vmem:[#allocation4 + $0x120] sm:$0xff]
    %v649 = vld [vmem:[#allocation4 + $0x128] sm:$0xff]
    %v650 = vld [vmem:[#allocation4 + $0x130] sm:$0xff]
    %v651 = vld [vmem:[#allocation4 + $0x138] sm:$0xff]
    %v652 = vld [vmem:[#allocation4 + $0x140] sm:$0xff]
    %v653 = vld [vmem:[#allocation4 + $0x148] sm:$0xff]
    %v654 = vld [vmem:[#allocation4 + $0x150] sm:$0xff]
    %v655 = vld [vmem:[#allocation4 + $0x158] sm:$0xff]
    %v656 = vld [vmem:[#allocation4 + $0x160] sm:$0xff]
    %v657 = vld [vmem:[#allocation4 + $0x168] sm:$0xff]
    %v658 = vld [vmem:[#allocation4 + $0x170] sm:$0xff]
    %v659 = vld [vmem:[#allocation4 + $0x178] sm:$0xff]
    %660 = vmatprep.subr.mxu0 %v658
    %661 = vmatpush1.msra.mxu0 %v657
    %662 = vmatprep.subr.mxu0 %v655
    %663 = vmatpush1.msra.mxu0 %v654
    %664 = vmatprep.subr.mxu0 %v652
    %665 = vmatpush1.msra.mxu0 %v651
    %666 = vmatprep.subr.mxu0 %v649
    %667 = vmatpush1.msra.mxu0 %v648
    %668 = vmatprep.subr.mxu0 %v646
    %669 = vmatpush1.msra.mxu0 %v645
    %670 = vmatprep.subr.mxu0 %v643
    %671 = vmatpush1.msra.mxu0 %v642
    %672 = vmatprep.subr.mxu0 %v640
    %673 = vmatpush1.msra.mxu0 %v639
    %674 = vmatprep.subr.mxu0 %v637
    %675 = vmatpush1.msra.mxu0 %v636
    %676 = vmatprep.subr.mxu0 %v634
    %677 = vmatpush1.msra.mxu0 %v633
    %678 = vmatprep.subr.mxu0 %v631
    %679 = vmatpush1.msra.mxu0 %v630
    %680 = vmatprep.subr.mxu0 %v628
    %681 = vmatpush1.msra.mxu0 %v627
    %682 = vmatprep.subr.mxu0 %v625
    %683 = vmatpush1.msra.mxu0 %v624
    %684 = vmatprep.subr.mxu0 %v622
    %685 = vmatpush1.msra.mxu0 %v621
    %686 = vmatprep.subr.mxu0 %v619
    %687 = vmatpush1.msra.mxu0 %v618
    %688 = vmatprep.subr.mxu0 %v616
    %689 = vmatpush1.msra.mxu0 %v615
    %690 = vmatprep.subr.mxu0 %v613
    %691 = vmatpush1.msra.mxu0 %v612
    %692 = vmatprep.subr.mxu0 0.0
    %693 = vmatpush2.msra.mxu0 0.0
    %694 = vmatprep.subr.mxu0 0.0
    %695 = vmatpush2.msra.mxu0 0.0
    %696 = vmatprep.subr.mxu0 0.0
    %697 = vmatpush2.msra.mxu0 0.0
    %698 = vmatprep.subr.mxu0 0.0
    %699 = vmatpush2.msra.mxu0 0.0
    %700 = vmatprep.subr.mxu0 0.0
    %701 = vmatpush2.msra.mxu0 0.0
    %702 = vmatprep.subr.mxu0 0.0
    %703 = vmatpush2.msra.mxu0 0.0
    %704 = vmatprep.subr.mxu0 0.0
    %705 = vmatpush2.msra.mxu0 0.0
    %706 = vmatprep.subr.mxu0 0.0
    %707 = vmatpush2.msra.mxu0 0.0
    %708 = vmatprep.subr.mxu0 0.0
    %709 = vmatpush2.msra.mxu0 0.0
    %710 = vmatprep.subr.mxu0 0.0
    %711 = vmatpush2.msra.mxu0 0.0
    %712 = vmatprep.subr.mxu0 0.0
    %713 = vmatpush2.msra.mxu0 0.0
    %714 = vmatprep.subr.mxu0 0.0
    %715 = vmatpush2.msra.mxu0 0.0
    %716 = vmatprep.subr.mxu0 0.0
    %717 = vmatpush2.msra.mxu0 0.0
    %718 = vmatprep.subr.mxu0 0.0
    %719 = vmatpush2.msra.mxu0 0.0
    %720 = vmatprep.subr.mxu0 0.0
    %721 = vmatpush2.msra.mxu0 0.0
    %722 = vmatprep.subr.mxu0 0.0
    %723 = vmatpush2.msra.mxu0 0.0
    %724 = vmatprep.mubr.f32.mxu0 0.0
    %725 = vmatmul.mubr.f32.gmra.mxu0 %v604
    %v726 = vpop.f32.mrf.mxu0
    %v727 = vadd.f32 %v376, %v726
    %v728 = vpop.f32.mrf.mxu0
    %v729 = vadd.f32 %v380, %v728
    %730 = vdwg.mxu0
    %731 = vmatprep.subr.mxu0 0.0
    %732 = vmatpush1.msra.mxu0 %v659
    %733 = vmatprep.subr.mxu0 0.0
    %734 = vmatpush1.msra.mxu0 %v656
    %735 = vmatprep.subr.mxu0 0.0
    %736 = vmatpush1.msra.mxu0 %v653
    %737 = vmatprep.subr.mxu0 0.0
    %738 = vmatpush1.msra.mxu0 %v650
    %739 = vmatprep.subr.mxu0 0.0
    %740 = vmatpush1.msra.mxu0 %v647
    %741 = vmatprep.subr.mxu0 0.0
    %742 = vmatpush1.msra.mxu0 %v644
    %743 = vmatprep.subr.mxu0 0.0
    %744 = vmatpush1.msra.mxu0 %v641
    %745 = vmatprep.subr.mxu0 0.0
    %746 = vmatpush1.msra.mxu0 %v638
    %747 = vmatprep.subr.mxu0 0.0
    %748 = vmatpush1.msra.mxu0 %v635
    %749 = vmatprep.subr.mxu0 0.0
    %750 = vmatpush1.msra.mxu0 %v632
    %751 = vmatprep.subr.mxu0 0.0
    %752 = vmatpush1.msra.mxu0 %v629
    %753 = vmatprep.subr.mxu0 0.0
    %754 = vmatpush1.msra.mxu0 %v626
    %755 = vmatprep.subr.mxu0 0.0
    %756 = vmatpush1.msra.mxu0 %v623
    %757 = vmatprep.subr.mxu0 0.0
    %758 = vmatpush1.msra.mxu0 %v620
    %759 = vmatprep.subr.mxu0 0.0
    %760 = vmatpush1.msra.mxu0 %v617
    %761 = vmatprep.subr.mxu0 0.0
    %762 = vmatpush1.msra.mxu0 %v614
    %763 = vmatprep.subr.mxu0 0.0
    %764 = vmatpush2.msra.mxu0 0.0
    %765 = vmatprep.subr.mxu0 0.0
    %766 = vmatpush2.msra.mxu0 0.0
    %767 = vmatprep.subr.mxu0 0.0
    %768 = vmatpush2.msra.mxu0 0.0
    %769 = vmatprep.subr.mxu0 0.0
    %770 = vmatpush2.msra.mxu0 0.0
    %771 = vmatprep.subr.mxu0 0.0
    %772 = vmatpush2.msra.mxu0 0.0
    %773 = vmatprep.subr.mxu0 0.0
    %774 = vmatpush2.msra.mxu0 0.0
    %775 = vmatprep.subr.mxu0 0.0
    %776 = vmatpush2.msra.mxu0 0.0
    %777 = vmatprep.subr.mxu0 0.0
    %778 = vmatpush2.msra.mxu0 0.0
    %779 = vmatprep.subr.mxu0 0.0
    %780 = vmatpush2.msra.mxu0 0.0
    %781 = vmatprep.subr.mxu0 0.0
    %782 = vmatpush2.msra.mxu0 0.0
    %783 = vmatprep.subr.mxu0 0.0
    %784 = vmatpush2.msra.mxu0 0.0
    %785 = vmatprep.subr.mxu0 0.0
    %786 = vmatpush2.msra.mxu0 0.0
    %787 = vmatprep.subr.mxu0 0.0
    %788 = vmatpush2.msra.mxu0 0.0
    %789 = vmatprep.subr.mxu0 0.0
    %790 = vmatpush2.msra.mxu0 0.0
    %791 = vmatprep.subr.mxu0 0.0
    %792 = vmatpush2.msra.mxu0 0.0
    %793 = vmatprep.subr.mxu0 0.0
    %794 = vmatpush2.msra.mxu0 0.0
    %795 = vmatprep.mubr.f32.mxu0 0.0
    %796 = vmatmul.mubr.f32.gmra.mxu0 %v604
    %v797 = vpop.f32.mrf.mxu0
    %v798 = vadd.f32 %v384, %v797
    %v799 = vpop.f32.mrf.mxu0
    %800 = vdwg.mxu0
    %v801 = vadd.f32 %v609, %v727
    %v802 = vxor.u32 %v801, 2147483648
    %v803 = vmul.f32 %v802, 1.442695
    %v804 = vpow.pop %v803
    %v805 = vadd.f32 %v804, 1.0
    %v806 = vrcp.pop %v805
    %v807 = vmul.f32 1.0, %v806
    %v808 = vadd.f32 %v610, %v729
    %v809 = vxor.u32 %v808, 2147483648
    %v810 = vmul.f32 %v809, 1.442695
    %v811 = vpow.pop %v810
    %v812 = vadd.f32 %v811, 1.0
    %v813 = vrcp.pop %v812
    %v814 = vmul.f32 1.0, %v813
    %v815 = vmul.f32 %v807, %v798
    %v816 = vadd.f32 %v611, %v815
    %v817 = vtanh.pop %v816
    %v818 = vsub.f32 1.0, %v814
    %v819 = vmul.f32 %v818, %v817
    %v820 = vmul.f32 %v814, %v604
    %v821 = vadd.f32 %v819, %v820
    %s822 = scalar_lea.vmem [#allocation3], 8
    %823 = vst [vmem:[%s822] sm:$0xff] %v821
    %s824 = smul.u32 2, 3
    %s825 = smul.addr %s824, 8
    %s826 = scalar_lea.vmem [#allocation2], %s825
    %v827 = vld [vmem:[%s826] sm:$0xff]
    %v828 = vld [vmem:[%s826 + $0x8] sm:$0xff]
    %v829 = vld [vmem:[%s826 + $0x10] sm:$0xff]
    %v830 = vld [vmem:[#allocation4] sm:$0xff]
    %v831 = vld [vmem:[#allocation4 + $0x8] sm:$0xff]
    %v832 = vld [vmem:[#allocation4 + $0x10] sm:$0xff]
    %v833 = vld [vmem:[#allocation4 + $0x18] sm:$0xff]
    %v834 = vld [vmem:[#allocation4 + $0x20] sm:$0xff]
    %v835 = vld [vmem:[#allocation4 + $0x28] sm:$0xff]
    %v836 = vld [vmem:[#allocation4 + $0x30] sm:$0xff]
    %v837 = vld [vmem:[#allocation4 + $0x38] sm:$0xff]
    %v838 = vld [vmem:[#allocation4 + $0x40] sm:$0xff]
    %v839 = vld [vmem:[#allocation4 + $0x48] sm:$0xff]
    %v840 = vld [vmem:[#allocation4 + $0x50] sm:$0xff]
    %v841 = vld [vmem:[#allocation4 + $0x58] sm:$0xff]
    %v842 = vld [vmem:[#allocation4 + $0x60] sm:$0xff]
    %v843 = vld [vmem:[#allocation4 + $0x68] sm:$0xff]
    %v844 = vld [vmem:[#allocation4 + $0x70] sm:$0xff]
    %v845 = vld [vmem:[#allocation4 + $0x78] sm:$0xff]
    %v846 = vld [vmem:[#allocation4 + $0x80] sm:$0xff]
    %v847 = vld [vmem:[#allocation4 + $0x88] sm:$0xff]
    %v848 = vld [vmem:[#allocation4 + $0x90] sm:$0xff]
    %v849 = vld [vmem:[#allocation4 + $0x98] sm:$0xff]
    %v850 = vld [vmem:[#allocation4 + $0xa0] sm:$0xff]
    %v851 = vld [vmem:[#allocation4 + $0xa8] sm:$0xff]
    %v852 = vld [vmem:[#allocation4 + $0xb0] sm:$0xff]
    %v853 = vld [vmem:[#allocation4 + $0xb8] sm:$0xff]
    %v854 = vld [vmem:[#allocation4 + $0xc0] sm:$0xff]
    %v855 = vld [vmem:[#allocation4 + $0xc8] sm:$0xff]
    %v856 = vld [vmem:[#allocation4 + $0xd0] sm:$0xff]
    %v857 = vld [vmem:[#allocation4 + $0xd8] sm:$0xff]
    %v858 = vld [vmem:[#allocation4 + $0xe0] sm:$0xff]
    %v859 = vld [vmem:[#allocation4 + $0xe8] sm:$0xff]
    %v860 = vld [vmem:[#allocation4 + $0xf0] sm:$0xff]
    %v861 = vld [vmem:[#allocation4 + $0xf8] sm:$0xff]
    %v862 = vld [vmem:[#allocation4 + $0x100] sm:$0xff]
    %v863 = vld [vmem:[#allocation4 + $0x108] sm:$0xff]
    %v864 = vld [vmem:[#allocation4 + $0x110] sm:$0xff]
    %v865 = vld [vmem:[#allocation4 + $0x118] sm:$0xff]
    %v866 = vld [vmem:[#allocation4 + $0x120] sm:$0xff]
    %v867 = vld [vmem:[#allocation4 + $0x128] sm:$0xff]
    %v868 = vld [vmem:[#allocation4 + $0x130] sm:$0xff]
    %v869 = vld [vmem:[#allocation4 + $0x138] sm:$0xff]
    %v870 = vld [vmem:[#allocation4 + $0x140] sm:$0xff]
    %v871 = vld [vmem:[#allocation4 + $0x148] sm:$0xff]
    %v872 = vld [vmem:[#allocation4 + $0x150] sm:$0xff]
    %v873 = vld [vmem:[#allocation4 + $0x158] sm:$0xff]
    %v874 = vld [vmem:[#allocation4 + $0x160] sm:$0xff]
    %v875 = vld [vmem:[#allocation4 + $0x168] sm:$0xff]
    %v876 = vld [vmem:[#allocation4 + $0x170] sm:$0xff]
    %v877 = vld [vmem:[#allocation4 + $0x178] sm:$0xff]
    %878 = vmatprep.subr.mxu0 %v876
    %879 = vmatpush1.msra.mxu0 %v875
    %880 = vmatprep.subr.mxu0 %v873
    %881 = vmatpush1.msra.mxu0 %v872
    %882 = vmatprep.subr.mxu0 %v870
    %883 = vmatpush1.msra.mxu0 %v869
    %884 = vmatprep.subr.mxu0 %v867
    %885 = vmatpush1.msra.mxu0 %v866
    %886 = vmatprep.subr.mxu0 %v864
    %887 = vmatpush1.msra.mxu0 %v863
    %888 = vmatprep.subr.mxu0 %v861
    %889 = vmatpush1.msra.mxu0 %v860
    %890 = vmatprep.subr.mxu0 %v858
    %891 = vmatpush1.msra.mxu0 %v857
    %892 = vmatprep.subr.mxu0 %v855
    %893 = vmatpush1.msra.mxu0 %v854
    %894 = vmatprep.subr.mxu0 %v852
    %895 = vmatpush1.msra.mxu0 %v851
    %896 = vmatprep.subr.mxu0 %v849
    %897 = vmatpush1.msra.mxu0 %v848
    %898 = vmatprep.subr.mxu0 %v846
    %899 = vmatpush1.msra.mxu0 %v845
    %900 = vmatprep.subr.mxu0 %v843
    %901 = vmatpush1.msra.mxu0 %v842
    %902 = vmatprep.subr.mxu0 %v840
    %903 = vmatpush1.msra.mxu0 %v839
    %904 = vmatprep.subr.mxu0 %v837
    %905 = vmatpush1.msra.mxu0 %v836
    %906 = vmatprep.subr.mxu0 %v834
    %907 = vmatpush1.msra.mxu0 %v833
    %908 = vmatprep.subr.mxu0 %v831
    %909 = vmatpush1.msra.mxu0 %v830
    %910 = vmatprep.subr.mxu0 0.0
    %911 = vmatpush2.msra.mxu0 0.0
    %912 = vmatprep.subr.mxu0 0.0
    %913 = vmatpush2.msra.mxu0 0.0
    %914 = vmatprep.subr.mxu0 0.0
    %915 = vmatpush2.msra.mxu0 0.0
    %916 = vmatprep.subr.mxu0 0.0
    %917 = vmatpush2.msra.mxu0 0.0
    %918 = vmatprep.subr.mxu0 0.0
    %919 = vmatpush2.msra.mxu0 0.0
    %920 = vmatprep.subr.mxu0 0.0
    %921 = vmatpush2.msra.mxu0 0.0
    %922 = vmatprep.subr.mxu0 0.0
    %923 = vmatpush2.msra.mxu0 0.0
    %924 = vmatprep.subr.mxu0 0.0
    %925 = vmatpush2.msra.mxu0 0.0
    %926 = vmatprep.subr.mxu0 0.0
    %927 = vmatpush2.msra.mxu0 0.0
    %928 = vmatprep.subr.mxu0 0.0
    %929 = vmatpush2.msra.mxu0 0.0
    %930 = vmatprep.subr.mxu0 0.0
    %931 = vmatpush2.msra.mxu0 0.0
    %932 = vmatprep.subr.mxu0 0.0
    %933 = vmatpush2.msra.mxu0 0.0
    %934 = vmatprep.subr.mxu0 0.0
    %935 = vmatpush2.msra.mxu0 0.0
    %936 = vmatprep.subr.mxu0 0.0
    %937 = vmatpush2.msra.mxu0 0.0
    %938 = vmatprep.subr.mxu0 0.0
    %939 = vmatpush2.msra.mxu0 0.0
    %940 = vmatprep.subr.mxu0 0.0
    %941 = vmatpush2.msra.mxu0 0.0
    %942 = vmatprep.mubr.f32.mxu0 0.0
    %943 = vmatmul.mubr.f32.gmra.mxu0 %v821
    %v944 = vpop.f32.mrf.mxu0
    %v945 = vadd.f32 %v376, %v944
    %v946 = vpop.f32.mrf.mxu0
    %v947 = vadd.f32 %v380, %v946
    %948 = vdwg.mxu0
    %949 = vmatprep.subr.mxu0 0.0
    %950 = vmatpush1.msra.mxu0 %v877
    %951 = vmatprep.subr.mxu0 0.0
    %952 = vmatpush1.msra.mxu0 %v874
    %953 = vmatprep.subr.mxu0 0.0
    %954 = vmatpush1.msra.mxu0 %v871
    %955 = vmatprep.subr.mxu0 0.0
    %956 = vmatpush1.msra.mxu0 %v868
    %957 = vmatprep.subr.mxu0 0.0
    %958 = vmatpush1.msra.mxu0 %v865
    %959 = vmatprep.subr.mxu0 0.0
    %960 = vmatpush1.msra.mxu0 %v862
    %961 = vmatprep.subr.mxu0 0.0
    %962 = vmatpush1.msra.mxu0 %v859
    %963 = vmatprep.subr.mxu0 0.0
    %964 = vmatpush1.msra.mxu0 %v856
    %965 = vmatprep.subr.mxu0 0.0
    %966 = vmatpush1.msra.mxu0 %v853
    %967 = vmatprep.subr.mxu0 0.0
    %968 = vmatpush1.msra.mxu0 %v850
    %969 = vmatprep.subr.mxu0 0.0
    %970 = vmatpush1.msra.mxu0 %v847
    %971 = vmatprep.subr.mxu0 0.0
    %972 = vmatpush1.msra.mxu0 %v844
    %973 = vmatprep.subr.mxu0 0.0
    %974 = vmatpush1.msra.mxu0 %v841
    %975 = vmatprep.subr.mxu0 0.0
    %976 = vmatpush1.msra.mxu0 %v838
    %977 = vmatprep.subr.mxu0 0.0
    %978 = vmatpush1.msra.mxu0 %v835
    %979 = vmatprep.subr.mxu0 0.0
    %980 = vmatpush1.msra.mxu0 %v832
    %981 = vmatprep.subr.mxu0 0.0
    %982 = vmatpush2.msra.mxu0 0.0
    %983 = vmatprep.subr.mxu0 0.0
    %984 = vmatpush2.msra.mxu0 0.0
    %985 = vmatprep.subr.mxu0 0.0
    %986 = vmatpush2.msra.mxu0 0.0
    %987 = vmatprep.subr.mxu0 0.0
    %988 = vmatpush2.msra.mxu0 0.0
    %989 = vmatprep.subr.mxu0 0.0
    %990 = vmatpush2.msra.mxu0 0.0
    %991 = vmatprep.subr.mxu0 0.0
    %992 = vmatpush2.msra.mxu0 0.0
    %993 = vmatprep.subr.mxu0 0.0
    %994 = vmatpush2.msra.mxu0 0.0
    %995 = vmatprep.subr.mxu0 0.0
    %996 = vmatpush2.msra.mxu0 0.0
    %997 = vmatprep.subr.mxu0 0.0
    %998 = vmatpush2.msra.mxu0 0.0
    %999 = vmatprep.subr.mxu0 0.0
    %1000 = vmatpush2.msra.mxu0 0.0
    %1001 = vmatprep.subr.mxu0 0.0
    %1002 = vmatpush2.msra.mxu0 0.0
    %1003 = vmatprep.subr.mxu0 0.0
    %1004 = vmatpush2.msra.mxu0 0.0
    %1005 = vmatprep.subr.mxu0 0.0
    %1006 = vmatpush2.msra.mxu0 0.0
    %1007 = vmatprep.subr.mxu0 0.0
    %1008 = vmatpush2.msra.mxu0 0.0
    %1009 = vmatprep.subr.mxu0 0.0
    %1010 = vmatpush2.msra.mxu0 0.0
    %1011 = vmatprep.subr.mxu0 0.0
    %1012 = vmatpush2.msra.mxu0 0.0
    %1013 = vmatprep.mubr.f32.mxu0 0.0
    %1014 = vmatmul.mubr.f32.gmra.mxu0 %v821
    %v1015 = vpop.f32.mrf.mxu0
    %v1016 = vadd.f32 %v384, %v1015
    %v1017 = vpop.f32.mrf.mxu0
    %1018 = vdwg.mxu0
    %v1019 = vadd.f32 %v827, %v945
    %v1020 = vxor.u32 %v1019, 2147483648
    %v1021 = vmul.f32 %v1020, 1.442695
    %v1022 = vpow.pop %v1021
    %v1023 = vadd.f32 %v1022, 1.0
    %v1024 = vrcp.pop %v1023
    %v1025 = vmul.f32 1.0, %v1024
    %v1026 = vadd.f32 %v828, %v947
    %v1027 = vxor.u32 %v1026, 2147483648
    %v1028 = vmul.f32 %v1027, 1.442695
    %v1029 = vpow.pop %v1028
    %v1030 = vadd.f32 %v1029, 1.0
    %v1031 = vrcp.pop %v1030
    %v1032 = vmul.f32 1.0, %v1031
    %v1033 = vmul.f32 %v1025, %v1016
    %v1034 = vadd.f32 %v829, %v1033
    %v1035 = vtanh.pop %v1034
    %v1036 = vsub.f32 1.0, %v1032
    %v1037 = vmul.f32 %v1036, %v1035
    %v1038 = vmul.f32 %v1032, %v821
    %v1039 = vadd.f32 %v1037, %v1038
    %s1040 = scalar_lea.vmem [#allocation3], 16
    %1041 = vst [vmem:[%s1040] sm:$0xff] %v1039
    %s1042 = smul.u32 3, 3
    %s1043 = smul.addr %s1042, 8
    %s1044 = scalar_lea.vmem [#allocation2], %s1043
    %v1045 = vld [vmem:[%s1044] sm:$0xff]
    %v1046 = vld [vmem:[%s1044 + $0x8] sm:$0xff]
    %v1047 = vld [vmem:[%s1044 + $0x10] sm:$0xff]
    %v1048 = vld [vmem:[#allocation4] sm:$0xff]
    %v1049 = vld [vmem:[#allocation4 + $0x8] sm:$0xff]
    %v1050 = vld [vmem:[#allocation4 + $0x10] sm:$0xff]
    %v1051 = vld [vmem:[#allocation4 + $0x18] sm:$0xff]
    %v1052 = vld [vmem:[#allocation4 + $0x20] sm:$0xff]
    %v1053 = vld [vmem:[#allocation4 + $0x28] sm:$0xff]
    %v1054 = vld [vmem:[#allocation4 + $0x30] sm:$0xff]
    %v1055 = vld [vmem:[#allocation4 + $0x38] sm:$0xff]
    %v1056 = vld [vmem:[#allocation4 + $0x40] sm:$0xff]
    %v1057 = vld [vmem:[#allocation4 + $0x48] sm:$0xff]
    %v1058 = vld [vmem:[#allocation4 + $0x50] sm:$0xff]
    %v1059 = vld [vmem:[#allocation4 + $0x58] sm:$0xff]
    %v1060 = vld [vmem:[#allocation4 + $0x60] sm:$0xff]
    %v1061 = vld [vmem:[#allocation4 + $0x68] sm:$0xff]
    %v1062 = vld [vmem:[#allocation4 + $0x70] sm:$0xff]
    %v1063 = vld [vmem:[#allocation4 + $0x78] sm:$0xff]
    %v1064 = vld [vmem:[#allocation4 + $0x80] sm:$0xff]
    %v1065 = vld [vmem:[#allocation4 + $0x88] sm:$0xff]
    %v1066 = vld [vmem:[#allocation4 + $0x90] sm:$0xff]
    %v1067 = vld [vmem:[#allocation4 + $0x98] sm:$0xff]
    %v1068 = vld [vmem:[#allocation4 + $0xa0] sm:$0xff]
    %v1069 = vld [vmem:[#allocation4 + $0xa8] sm:$0xff]
    %v1070 = vld [vmem:[#allocation4 + $0xb0] sm:$0xff]
    %v1071 = vld [vmem:[#allocation4 + $0xb8] sm:$0xff]
    %v1072 = vld [vmem:[#allocation4 + $0xc0] sm:$0xff]
    %v1073 = vld [vmem:[#allocation4 + $0xc8] sm:$0xff]
    %v1074 = vld [vmem:[#allocation4 + $0xd0] sm:$0xff]
    %v1075 = vld [vmem:[#allocation4 + $0xd8] sm:$0xff]
    %v1076 = vld [vmem:[#allocation4 + $0xe0] sm:$0xff]
    %v1077 = vld [vmem:[#allocation4 + $0xe8] sm:$0xff]
    %v1078 = vld [vmem:[#allocation4 + $0xf0] sm:$0xff]
    %v1079 = vld [vmem:[#allocation4 + $0xf8] sm:$0xff]
    %v1080 = vld [vmem:[#allocation4 + $0x100] sm:$0xff]
    %v1081 = vld [vmem:[#allocation4 + $0x108] sm:$0xff]
    %v1082 = vld [vmem:[#allocation4 + $0x110] sm:$0xff]
    %v1083 = vld [vmem:[#allocation4 + $0x118] sm:$0xff]
    %v1084 = vld [vmem:[#allocation4 + $0x120] sm:$0xff]
    %v1085 = vld [vmem:[#allocation4 + $0x128] sm:$0xff]
    %v1086 = vld [vmem:[#allocation4 + $0x130] sm:$0xff]
    %v1087 = vld [vmem:[#allocation4 + $0x138] sm:$0xff]
    %v1088 = vld [vmem:[#allocation4 + $0x140] sm:$0xff]
    %v1089 = vld [vmem:[#allocation4 + $0x148] sm:$0xff]
    %v1090 = vld [vmem:[#allocation4 + $0x150] sm:$0xff]
    %v1091 = vld [vmem:[#allocation4 + $0x158] sm:$0xff]
    %v1092 = vld [vmem:[#allocation4 + $0x160] sm:$0xff]
    %v1093 = vld [vmem:[#allocation4 + $0x168] sm:$0xff]
    %v1094 = vld [vmem:[#allocation4 + $0x170] sm:$0xff]
    %v1095 = vld [vmem:[#allocation4 + $0x178] sm:$0xff]
    %1096 = vmatprep.subr.mxu0 %v1094
    %1097 = vmatpush1.msra.mxu0 %v1093
    %1098 = vmatprep.subr.mxu0 %v1091
    %1099 = vmatpush1.msra.mxu0 %v1090
    %1100 = vmatprep.subr.mxu0 %v1088
    %1101 = vmatpush1.msra.mxu0 %v1087
    %1102 = vmatprep.subr.mxu0 %v1085
    %1103 = vmatpush1.msra.mxu0 %v1084
    %1104 = vmatprep.subr.mxu0 %v1082
    %1105 = vmatpush1.msra.mxu0 %v1081
    %1106 = vmatprep.subr.mxu0 %v1079
    %1107 = vmatpush1.msra.mxu0 %v1078
    %1108 = vmatprep.subr.mxu0 %v1076
    %1109 = vmatpush1.msra.mxu0 %v1075
    %1110 = vmatprep.subr.mxu0 %v1073
    %1111 = vmatpush1.msra.mxu0 %v1072
    %1112 = vmatprep.subr.mxu0 %v1070
    %1113 = vmatpush1.msra.mxu0 %v1069
    %1114 = vmatprep.subr.mxu0 %v1067
    %1115 = vmatpush1.msra.mxu0 %v1066
    %1116 = vmatprep.subr.mxu0 %v1064
    %1117 = vmatpush1.msra.mxu0 %v1063
    %1118 = vmatprep.subr.mxu0 %v1061
    %1119 = vmatpush1.msra.mxu0 %v1060
    %1120 = vmatprep.subr.mxu0 %v1058
    %1121 = vmatpush1.msra.mxu0 %v1057
    %1122 = vmatprep.subr.mxu0 %v1055
    %1123 = vmatpush1.msra.mxu0 %v1054
    %1124 = vmatprep.subr.mxu0 %v1052
    %1125 = vmatpush1.msra.mxu0 %v1051
    %1126 = vmatprep.subr.mxu0 %v1049
    %1127 = vmatpush1.msra.mxu0 %v1048
    %1128 = vmatprep.subr.mxu0 0.0
    %1129 = vmatpush2.msra.mxu0 0.0
    %1130 = vmatprep.subr.mxu0 0.0
    %1131 = vmatpush2.msra.mxu0 0.0
    %1132 = vmatprep.subr.mxu0 0.0
    %1133 = vmatpush2.msra.mxu0 0.0
    %1134 = vmatprep.subr.mxu0 0.0
    %1135 = vmatpush2.msra.mxu0 0.0
    %1136 = vmatprep.subr.mxu0 0.0
    %1137 = vmatpush2.msra.mxu0 0.0
    %1138 = vmatprep.subr.mxu0 0.0
    %1139 = vmatpush2.msra.mxu0 0.0
    %1140 = vmatprep.subr.mxu0 0.0
    %1141 = vmatpush2.msra.mxu0 0.0
    %1142 = vmatprep.subr.mxu0 0.0
    %1143 = vmatpush2.msra.mxu0 0.0
    %1144 = vmatprep.subr.mxu0 0.0
    %1145 = vmatpush2.msra.mxu0 0.0
    %1146 = vmatprep.subr.mxu0 0.0
    %1147 = vmatpush2.msra.mxu0 0.0
    %1148 = vmatprep.subr.mxu0 0.0
    %1149 = vmatpush2.msra.mxu0 0.0
    %1150 = vmatprep.subr.mxu0 0.0
    %1151 = vmatpush2.msra.mxu0 0.0
    %1152 = vmatprep.subr.mxu0 0.0
    %1153 = vmatpush2.msra.mxu0 0.0
    %1154 = vmatprep.subr.mxu0 0.0
    %1155 = vmatpush2.msra.mxu0 0.0
    %1156 = vmatprep.subr.mxu0 0.0
    %1157 = vmatpush2.msra.mxu0 0.0
    %1158 = vmatprep.subr.mxu0 0.0
    %1159 = vmatpush2.msra.mxu0 0.0
    %1160 = vmatprep.mubr.f32.mxu0 0.0
    %1161 = vmatmul.mubr.f32.gmra.mxu0 %v1039
    %v1162 = vpop.f32.mrf.mxu0
    %v1163 = vadd.f32 %v376, %v1162
    %v1164 = vpop.f32.mrf.mxu0
    %v1165 = vadd.f32 %v380, %v1164
    %1166 = vdwg.mxu0
    %1167 = vmatprep.subr.mxu0 0.0
    %1168 = vmatpush1.msra.mxu0 %v1095
    %1169 = vmatprep.subr.mxu0 0.0
    %1170 = vmatpush1.msra.mxu0 %v1092
    %1171 = vmatprep.subr.mxu0 0.0
    %1172 = vmatpush1.msra.mxu0 %v1089
    %1173 = vmatprep.subr.mxu0 0.0
    %1174 = vmatpush1.msra.mxu0 %v1086
    %1175 = vmatprep.subr.mxu0 0.0
    %1176 = vmatpush1.msra.mxu0 %v1083
    %1177 = vmatprep.subr.mxu0 0.0
    %1178 = vmatpush1.msra.mxu0 %v1080
    %1179 = vmatprep.subr.mxu0 0.0
    %1180 = vmatpush1.msra.mxu0 %v1077
    %1181 = vmatprep.subr.mxu0 0.0
    %1182 = vmatpush1.msra.mxu0 %v1074
    %1183 = vmatprep.subr.mxu0 0.0
    %1184 = vmatpush1.msra.mxu0 %v1071
    %1185 = vmatprep.subr.mxu0 0.0
    %1186 = vmatpush1.msra.mxu0 %v1068
    %1187 = vmatprep.subr.mxu0 0.0
    %1188 = vmatpush1.msra.mxu0 %v1065
    %1189 = vmatprep.subr.mxu0 0.0
    %1190 = vmatpush1.msra.mxu0 %v1062
    %1191 = vmatprep.subr.mxu0 0.0
    %1192 = vmatpush1.msra.mxu0 %v1059
    %1193 = vmatprep.subr.mxu0 0.0
    %1194 = vmatpush1.msra.mxu0 %v1056
    %1195 = vmatprep.subr.mxu0 0.0
    %1196 = vmatpush1.msra.mxu0 %v1053
    %1197 = vmatprep.subr.mxu0 0.0
    %1198 = vmatpush1.msra.mxu0 %v1050
    %1199 = vmatprep.subr.mxu0 0.0
    %1200 = vmatpush2.msra.mxu0 0.0
    %1201 = vmatprep.subr.mxu0 0.0
    %1202 = vmatpush2.msra.mxu0 0.0
    %1203 = vmatprep.subr.mxu0 0.0
    %1204 = vmatpush2.msra.mxu0 0.0
    %1205 = vmatprep.subr.mxu0 0.0
    %1206 = vmatpush2.msra.mxu0 0.0
    %1207 = vmatprep.subr.mxu0 0.0
    %1208 = vmatpush2.msra.mxu0 0.0
    %1209 = vmatprep.subr.mxu0 0.0
    %1210 = vmatpush2.msra.mxu0 0.0
    %1211 = vmatprep.subr.mxu0 0.0
    %1212 = vmatpush2.msra.mxu0 0.0
    %1213 = vmatprep.subr.mxu0 0.0
    %1214 = vmatpush2.msra.mxu0 0.0
    %1215 = vmatprep.subr.mxu0 0.0
    %1216 = vmatpush2.msra.mxu0 0.0
    %1217 = vmatprep.subr.mxu0 0.0
    %1218 = vmatpush2.msra.mxu0 0.0
    %1219 = vmatprep.subr.mxu0 0.0
    %1220 = vmatpush2.msra.mxu0 0.0
    %1221 = vmatprep.subr.mxu0 0.0
    %1222 = vmatpush2.msra.mxu0 0.0
    %1223 = vmatprep.subr.mxu0 0.0
    %1224 = vmatpush2.msra.mxu0 0.0
    %1225 = vmatprep.subr.mxu0 0.0
    %1226 = vmatpush2.msra.mxu0 0.0
    %1227 = vmatprep.subr.mxu0 0.0
    %1228 = vmatpush2.msra.mxu0 0.0
    %1229 = vmatprep.subr.mxu0 0.0
    %1230 = vmatpush2.msra.mxu0 0.0
    %1231 = vmatprep.mubr.f32.mxu0 0.0
    %1232 = vmatmul.mubr.f32.gmra.mxu0 %v1039
    %v1233 = vpop.f32.mrf.mxu0
    %v1234 = vadd.f32 %v384, %v1233
    %v1235 = vpop.f32.mrf.mxu0
    %1236 = vdwg.mxu0
    %v1237 = vadd.f32 %v1045, %v1163
    %v1238 = vxor.u32 %v1237, 2147483648
    %v1239 = vmul.f32 %v1238, 1.442695
    %v1240 = vpow.pop %v1239
    %v1241 = vadd.f32 %v1240, 1.0
    %v1242 = vrcp.pop %v1241
    %v1243 = vmul.f32 1.0, %v1242
    %v1244 = vadd.f32 %v1046, %v1165
    %v1245 = vxor.u32 %v1244, 2147483648
    %v1246 = vmul.f32 %v1245, 1.442695
    %v1247 = vpow.pop %v1246
    %v1248 = vadd.f32 %v1247, 1.0
    %v1249 = vrcp.pop %v1248
    %v1250 = vmul.f32 1.0, %v1249
    %v1251 = vmul.f32 %v1243, %v1234
    %v1252 = vadd.f32 %v1047, %v1251
    %v1253 = vtanh.pop %v1252
    %v1254 = vsub.f32 1.0, %v1250
    %v1255 = vmul.f32 %v1254, %v1253
    %v1256 = vmul.f32 %v1250, %v1039
    %v1257 = vadd.f32 %v1255, %v1256
    %s1258 = scalar_lea.vmem [#allocation3], 24
    %1259 = vst [vmem:[%s1258] sm:$0xff] %v1257
    %s1260 = smul.u32 4, 3
    %s1261 = smul.addr %s1260, 8
    %s1262 = scalar_lea.vmem [#allocation2], %s1261
    %v1263 = vld [vmem:[%s1262] sm:$0xff]
    %v1264 = vld [vmem:[%s1262 + $0x8] sm:$0xff]
    %v1265 = vld [vmem:[%s1262 + $0x10] sm:$0xff]
    %v1266 = vld [vmem:[#allocation4] sm:$0xff]
    %v1267 = vld [vmem:[#allocation4 + $0x8] sm:$0xff]
    %v1268 = vld [vmem:[#allocation4 + $0x10] sm:$0xff]
    %v1269 = vld [vmem:[#allocation4 + $0x18] sm:$0xff]
    %v1270 = vld [vmem:[#allocation4 + $0x20] sm:$0xff]
    %v1271 = vld [vmem:[#allocation4 + $0x28] sm:$0xff]
    %v1272 = vld [vmem:[#allocation4 + $0x30] sm:$0xff]
    %v1273 = vld [vmem:[#allocation4 + $0x38] sm:$0xff]
    %v1274 = vld [vmem:[#allocation4 + $0x40] sm:$0xff]
    %v1275 = vld [vmem:[#allocation4 + $0x48] sm:$0xff]
    %v1276 = vld [vmem:[#allocation4 + $0x50] sm:$0xff]
    %v1277 = vld [vmem:[#allocation4 + $0x58] sm:$0xff]
    %v1278 = vld [vmem:[#allocation4 + $0x60] sm:$0xff]
    %v1279 = vld [vmem:[#allocation4 + $0x68] sm:$0xff]
    %v1280 = vld [vmem:[#allocation4 + $0x70] sm:$0xff]
    %v1281 = vld [vmem:[#allocation4 + $0x78] sm:$0xff]
    %v1282 = vld [vmem:[#allocation4 + $0x80] sm:$0xff]
    %v1283 = vld [vmem:[#allocation4 + $0x88] sm:$0xff]
    %v1284 = vld [vmem:[#allocation4 + $0x90] sm:$0xff]
    %v1285 = vld [vmem:[#allocation4 + $0x98] sm:$0xff]
    %v1286 = vld [vmem:[#allocation4 + $0xa0] sm:$0xff]
    %v1287 = vld [vmem:[#allocation4 + $0xa8] sm:$0xff]
    %v1288 = vld [vmem:[#allocation4 + $0xb0] sm:$0xff]
    %v1289 = vld [vmem:[#allocation4 + $0xb8] sm:$0xff]
    %v1290 = vld [vmem:[#allocation4 + $0xc0] sm:$0xff]
    %v1291 = vld [vmem:[#allocation4 + $0xc8] sm:$0xff]
    %v1292 = vld [vmem:[#allocation4 + $0xd0] sm:$0xff]
    %v1293 = vld [vmem:[#allocation4 + $0xd8] sm:$0xff]
    %v1294 = vld [vmem:[#allocation4 + $0xe0] sm:$0xff]
    %v1295 = vld [vmem:[#allocation4 + $0xe8] sm:$0xff]
    %v1296 = vld [vmem:[#allocation4 + $0xf0] sm:$0xff]
    %v1297 = vld [vmem:[#allocation4 + $0xf8] sm:$0xff]
    %v1298 = vld [vmem:[#allocation4 + $0x100] sm:$0xff]
    %v1299 = vld [vmem:[#allocation4 + $0x108] sm:$0xff]
    %v1300 = vld [vmem:[#allocation4 + $0x110] sm:$0xff]
    %v1301 = vld [vmem:[#allocation4 + $0x118] sm:$0xff]
    %v1302 = vld [vmem:[#allocation4 + $0x120] sm:$0xff]
    %v1303 = vld [vmem:[#allocation4 + $0x128] sm:$0xff]
    %v1304 = vld [vmem:[#allocation4 + $0x130] sm:$0xff]
    %v1305 = vld [vmem:[#allocation4 + $0x138] sm:$0xff]
    %v1306 = vld [vmem:[#allocation4 + $0x140] sm:$0xff]
    %v1307 = vld [vmem:[#allocation4 + $0x148] sm:$0xff]
    %v1308 = vld [vmem:[#allocation4 + $0x150] sm:$0xff]
    %v1309 = vld [vmem:[#allocation4 + $0x158] sm:$0xff]
    %v1310 = vld [vmem:[#allocation4 + $0x160] sm:$0xff]
    %v1311 = vld [vmem:[#allocation4 + $0x168] sm:$0xff]
    %v1312 = vld [vmem:[#allocation4 + $0x170] sm:$0xff]
    %v1313 = vld [vmem:[#allocation4 + $0x178] sm:$0xff]
    %1314 = vmatprep.subr.mxu0 %v1312
    %1315 = vmatpush1.msra.mxu0 %v1311
    %1316 = vmatprep.subr.mxu0 %v1309
    %1317 = vmatpush1.msra.mxu0 %v1308
    %1318 = vmatprep.subr.mxu0 %v1306
    %1319 = vmatpush1.msra.mxu0 %v1305
    %1320 = vmatprep.subr.mxu0 %v1303
    %1321 = vmatpush1.msra.mxu0 %v1302
    %1322 = vmatprep.subr.mxu0 %v1300
    %1323 = vmatpush1.msra.mxu0 %v1299
    %1324 = vmatprep.subr.mxu0 %v1297
    %1325 = vmatpush1.msra.mxu0 %v1296
    %1326 = vmatprep.subr.mxu0 %v1294
    %1327 = vmatpush1.msra.mxu0 %v1293
    %1328 = vmatprep.subr.mxu0 %v1291
    %1329 = vmatpush1.msra.mxu0 %v1290
    %1330 = vmatprep.subr.mxu0 %v1288
    %1331 = vmatpush1.msra.mxu0 %v1287
    %1332 = vmatprep.subr.mxu0 %v1285
    %1333 = vmatpush1.msra.mxu0 %v1284
    %1334 = vmatprep.subr.mxu0 %v1282
    %1335 = vmatpush1.msra.mxu0 %v1281
    %1336 = vmatprep.subr.mxu0 %v1279
    %1337 = vmatpush1.msra.mxu0 %v1278
    %1338 = vmatprep.subr.mxu0 %v1276
    %1339 = vmatpush1.msra.mxu0 %v1275
    %1340 = vmatprep.subr.mxu0 %v1273
    %1341 = vmatpush1.msra.mxu0 %v1272
    %1342 = vmatprep.subr.mxu0 %v1270
    %1343 = vmatpush1.msra.mxu0 %v1269
    %1344 = vmatprep.subr.mxu0 %v1267
    %1345 = vmatpush1.msra.mxu0 %v1266
    %1346 = vmatprep.subr.mxu0 0.0
    %1347 = vmatpush2.msra.mxu0 0.0
    %1348 = vmatprep.subr.mxu0 0.0
    %1349 = vmatpush2.msra.mxu0 0.0
    %1350 = vmatprep.subr.mxu0 0.0
    %1351 = vmatpush2.msra.mxu0 0.0
    %1352 = vmatprep.subr.mxu0 0.0
    %1353 = vmatpush2.msra.mxu0 0.0
    %1354 = vmatprep.subr.mxu0 0.0
    %1355 = vmatpush2.msra.mxu0 0.0
    %1356 = vmatprep.subr.mxu0 0.0
    %1357 = vmatpush2.msra.mxu0 0.0
    %1358 = vmatprep.subr.mxu0 0.0
    %1359 = vmatpush2.msra.mxu0 0.0
    %1360 = vmatprep.subr.mxu0 0.0
    %1361 = vmatpush2.msra.mxu0 0.0
    %1362 = vmatprep.subr.mxu0 0.0
    %1363 = vmatpush2.msra.mxu0 0.0
    %1364 = vmatprep.subr.mxu0 0.0
    %1365 = vmatpush2.msra.mxu0 0.0
    %1366 = vmatprep.subr.mxu0 0.0
    %1367 = vmatpush2.msra.mxu0 0.0
    %1368 = vmatprep.subr.mxu0 0.0
    %1369 = vmatpush2.msra.mxu0 0.0
    %1370 = vmatprep.subr.mxu0 0.0
    %1371 = vmatpush2.msra.mxu0 0.0
    %1372 = vmatprep.subr.mxu0 0.0
    %1373 = vmatpush2.msra.mxu0 0.0
    %1374 = vmatprep.subr.mxu0 0.0
    %1375 = vmatpush2.msra.mxu0 0.0
    %1376 = vmatprep.subr.mxu0 0.0
    %1377 = vmatpush2.msra.mxu0 0.0
    %1378 = vmatprep.mubr.f32.mxu0 0.0
    %1379 = vmatmul.mubr.f32.gmra.mxu0 %v1257
    %v1380 = vpop.f32.mrf.mxu0
    %v1381 = vadd.f32 %v376, %v1380
    %v1382 = vpop.f32.mrf.mxu0
    %v1383 = vadd.f32 %v380, %v1382
    %1384 = vdwg.mxu0
    %1385 = vmatprep.subr.mxu0 0.0
    %1386 = vmatpush1.msra.mxu0 %v1313
    %1387 = vmatprep.subr.mxu0 0.0
    %1388 = vmatpush1.msra.mxu0 %v1310
    %1389 = vmatprep.subr.mxu0 0.0
    %1390 = vmatpush1.msra.mxu0 %v1307
    %1391 = vmatprep.subr.mxu0 0.0
    %1392 = vmatpush1.msra.mxu0 %v1304
    %1393 = vmatprep.subr.mxu0 0.0
    %1394 = vmatpush1.msra.mxu0 %v1301
    %1395 = vmatprep.subr.mxu0 0.0
    %1396 = vmatpush1.msra.mxu0 %v1298
    %1397 = vmatprep.subr.mxu0 0.0
    %1398 = vmatpush1.msra.mxu0 %v1295
    %1399 = vmatprep.subr.mxu0 0.0
    %1400 = vmatpush1.msra.mxu0 %v1292
    %1401 = vmatprep.subr.mxu0 0.0
    %1402 = vmatpush1.msra.mxu0 %v1289
    %1403 = vmatprep.subr.mxu0 0.0
    %1404 = vmatpush1.msra.mxu0 %v1286
    %1405 = vmatprep.subr.mxu0 0.0
    %1406 = vmatpush1.msra.mxu0 %v1283
    %1407 = vmatprep.subr.mxu0 0.0
    %1408 = vmatpush1.msra.mxu0 %v1280
    %1409 = vmatprep.subr.mxu0 0.0
    %1410 = vmatpush1.msra.mxu0 %v1277
    %1411 = vmatprep.subr.mxu0 0.0
    %1412 = vmatpush1.msra.mxu0 %v1274
    %1413 = vmatprep.subr.mxu0 0.0
    %1414 = vmatpush1.msra.mxu0 %v1271
    %1415 = vmatprep.subr.mxu0 0.0
    %1416 = vmatpush1.msra.mxu0 %v1268
    %1417 = vmatprep.subr.mxu0 0.0
    %1418 = vmatpush2.msra.mxu0 0.0
    %1419 = vmatprep.subr.mxu0 0.0
    %1420 = vmatpush2.msra.mxu0 0.0
    %1421 = vmatprep.subr.mxu0 0.0
    %1422 = vmatpush2.msra.mxu0 0.0
    %1423 = vmatprep.subr.mxu0 0.0
    %1424 = vmatpush2.msra.mxu0 0.0
    %1425 = vmatprep.subr.mxu0 0.0
    %1426 = vmatpush2.msra.mxu0 0.0
    %1427 = vmatprep.subr.mxu0 0.0
    %1428 = vmatpush2.msra.mxu0 0.0
    %1429 = vmatprep.subr.mxu0 0.0
    %1430 = vmatpush2.msra.mxu0 0.0
    %1431 = vmatprep.subr.mxu0 0.0
    %1432 = vmatpush2.msra.mxu0 0.0
    %1433 = vmatprep.subr.mxu0 0.0
    %1434 = vmatpush2.msra.mxu0 0.0
    %1435 = vmatprep.subr.mxu0 0.0
    %1436 = vmatpush2.msra.mxu0 0.0
    %1437 = vmatprep.subr.mxu0 0.0
    %1438 = vmatpush2.msra.mxu0 0.0
    %1439 = vmatprep.subr.mxu0 0.0
    %1440 = vmatpush2.msra.mxu0 0.0
    %1441 = vmatprep.subr.mxu0 0.0
    %1442 = vmatpush2.msra.mxu0 0.0
    %1443 = vmatprep.subr.mxu0 0.0
    %1444 = vmatpush2.msra.mxu0 0.0
    %1445 = vmatprep.subr.mxu0 0.0
    %1446 = vmatpush2.msra.mxu0 0.0
    %1447 = vmatprep.subr.mxu0 0.0
    %1448 = vmatpush2.msra.mxu0 0.0
    %1449 = vmatprep.mubr.f32.mxu0 0.0
    %1450 = vmatmul.mubr.f32.gmra.mxu0 %v1257
    %v1451 = vpop.f32.mrf.mxu0
    %v1452 = vadd.f32 %v384, %v1451
    %v1453 = vpop.f32.mrf.mxu0
    %1454 = vdwg.mxu0
    %v1455 = vadd.f32 %v1263, %v1381
    %v1456 = vxor.u32 %v1455, 2147483648
    %v1457 = vmul.f32 %v1456, 1.442695
    %v1458 = vpow.pop %v1457
    %v1459 = vadd.f32 %v1458, 1.0
    %v1460 = vrcp.pop %v1459
    %v1461 = vmul.f32 1.0, %v1460
    %v1462 = vadd.f32 %v1264, %v1383
    %v1463 = vxor.u32 %v1462, 2147483648
    %v1464 = vmul.f32 %v1463, 1.442695
    %v1465 = vpow.pop %v1464
    %v1466 = vadd.f32 %v1465, 1.0
    %v1467 = vrcp.pop %v1466
    %v1468 = vmul.f32 1.0, %v1467
    %v1469 = vmul.f32 %v1461, %v1452
    %v1470 = vadd.f32 %v1265, %v1469
    %v1471 = vtanh.pop %v1470
    %v1472 = vsub.f32 1.0, %v1468
    %v1473 = vmul.f32 %v1472, %v1471
    %v1474 = vmul.f32 %v1468, %v1257
    %v1475 = vadd.f32 %v1473, %v1474
    %s1476 = scalar_lea.vmem [#allocation3], 32
    %1477 = vst [vmem:[%s1476] sm:$0xff] %v1475
    %s1478 = smul.u32 5, 3
    %s1479 = smul.addr %s1478, 8
    %s1480 = scalar_lea.vmem [#allocation2], %s1479
    %v1481 = vld [vmem:[%s1480] sm:$0xff]
    %v1482 = vld [vmem:[%s1480 + $0x8] sm:$0xff]
    %v1483 = vld [vmem:[%s1480 + $0x10] sm:$0xff]
    %v1484 = vld [vmem:[#allocation4] sm:$0xff]
    %v1485 = vld [vmem:[#allocation4 + $0x8] sm:$0xff]
    %v1486 = vld [vmem:[#allocation4 + $0x10] sm:$0xff]
    %v1487 = vld [vmem:[#allocation4 + $0x18] sm:$0xff]
    %v1488 = vld [vmem:[#allocation4 + $0x20] sm:$0xff]
    %v1489 = vld [vmem:[#allocation4 + $0x28] sm:$0xff]
    %v1490 = vld [vmem:[#allocation4 + $0x30] sm:$0xff]
    %v1491 = vld [vmem:[#allocation4 + $0x38] sm:$0xff]
    %v1492 = vld [vmem:[#allocation4 + $0x40] sm:$0xff]
    %v1493 = vld [vmem:[#allocation4 + $0x48] sm:$0xff]
    %v1494 = vld [vmem:[#allocation4 + $0x50] sm:$0xff]
    %v1495 = vld [vmem:[#allocation4 + $0x58] sm:$0xff]
    %v1496 = vld [vmem:[#allocation4 + $0x60] sm:$0xff]
    %v1497 = vld [vmem:[#allocation4 + $0x68] sm:$0xff]
    %v1498 = vld [vmem:[#allocation4 + $0x70] sm:$0xff]
    %v1499 = vld [vmem:[#allocation4 + $0x78] sm:$0xff]
    %v1500 = vld [vmem:[#allocation4 + $0x80] sm:$0xff]
    %v1501 = vld [vmem:[#allocation4 + $0x88] sm:$0xff]
    %v1502 = vld [vmem:[#allocation4 + $0x90] sm:$0xff]
    %v1503 = vld [vmem:[#allocation4 + $0x98] sm:$0xff]
    %v1504 = vld [vmem:[#allocation4 + $0xa0] sm:$0xff]
    %v1505 = vld [vmem:[#allocation4 + $0xa8] sm:$0xff]
    %v1506 = vld [vmem:[#allocation4 + $0xb0] sm:$0xff]
    %v1507 = vld [vmem:[#allocation4 + $0xb8] sm:$0xff]
    %v1508 = vld [vmem:[#allocation4 + $0xc0] sm:$0xff]
    %v1509 = vld [vmem:[#allocation4 + $0xc8] sm:$0xff]
    %v1510 = vld [vmem:[#allocation4 + $0xd0] sm:$0xff]
    %v1511 = vld [vmem:[#allocation4 + $0xd8] sm:$0xff]
    %v1512 = vld [vmem:[#allocation4 + $0xe0] sm:$0xff]
    %v1513 = vld [vmem:[#allocation4 + $0xe8] sm:$0xff]
    %v1514 = vld [vmem:[#allocation4 + $0xf0] sm:$0xff]
    %v1515 = vld [vmem:[#allocation4 + $0xf8] sm:$0xff]
    %v1516 = vld [vmem:[#allocation4 + $0x100] sm:$0xff]
    %v1517 = vld [vmem:[#allocation4 + $0x108] sm:$0xff]
    %v1518 = vld [vmem:[#allocation4 + $0x110] sm:$0xff]
    %v1519 = vld [vmem:[#allocation4 + $0x118] sm:$0xff]
    %v1520 = vld [vmem:[#allocation4 + $0x120] sm:$0xff]
    %v1521 = vld [vmem:[#allocation4 + $0x128] sm:$0xff]
    %v1522 = vld [vmem:[#allocation4 + $0x130] sm:$0xff]
    %v1523 = vld [vmem:[#allocation4 + $0x138] sm:$0xff]
    %v1524 = vld [vmem:[#allocation4 + $0x140] sm:$0xff]
    %v1525 = vld [vmem:[#allocation4 + $0x148] sm:$0xff]
    %v1526 = vld [vmem:[#allocation4 + $0x150] sm:$0xff]
    %v1527 = vld [vmem:[#allocation4 + $0x158] sm:$0xff]
    %v1528 = vld [vmem:[#allocation4 + $0x160] sm:$0xff]
    %v1529 = vld [vmem:[#allocation4 + $0x168] sm:$0xff]
    %v1530 = vld [vmem:[#allocation4 + $0x170] sm:$0xff]
    %v1531 = vld [vmem:[#allocation4 + $0x178] sm:$0xff]
    %1532 = vmatprep.subr.mxu0 %v1530
    %1533 = vmatpush1.msra.mxu0 %v1529
    %1534 = vmatprep.subr.mxu0 %v1527
    %1535 = vmatpush1.msra.mxu0 %v1526
    %1536 = vmatprep.subr.mxu0 %v1524
    %1537 = vmatpush1.msra.mxu0 %v1523
    %1538 = vmatprep.subr.mxu0 %v1521
    %1539 = vmatpush1.msra.mxu0 %v1520
    %1540 = vmatprep.subr.mxu0 %v1518
    %1541 = vmatpush1.msra.mxu0 %v1517
    %1542 = vmatprep.subr.mxu0 %v1515
    %1543 = vmatpush1.msra.mxu0 %v1514
    %1544 = vmatprep.subr.mxu0 %v1512
    %1545 = vmatpush1.msra.mxu0 %v1511
    %1546 = vmatprep.subr.mxu0 %v1509
    %1547 = vmatpush1.msra.mxu0 %v1508
    %1548 = vmatprep.subr.mxu0 %v1506
    %1549 = vmatpush1.msra.mxu0 %v1505
    %1550 = vmatprep.subr.mxu0 %v1503
    %1551 = vmatpush1.msra.mxu0 %v1502
    %1552 = vmatprep.subr.mxu0 %v1500
    %1553 = vmatpush1.msra.mxu0 %v1499
    %1554 = vmatprep.subr.mxu0 %v1497
    %1555 = vmatpush1.msra.mxu0 %v1496
    %1556 = vmatprep.subr.mxu0 %v1494
    %1557 = vmatpush1.msra.mxu0 %v1493
    %1558 = vmatprep.subr.mxu0 %v1491
    %1559 = vmatpush1.msra.mxu0 %v1490
    %1560 = vmatprep.subr.mxu0 %v1488
    %1561 = vmatpush1.msra.mxu0 %v1487
    %1562 = vmatprep.subr.mxu0 %v1485
    %1563 = vmatpush1.msra.mxu0 %v1484
    %1564 = vmatprep.subr.mxu0 0.0
    %1565 = vmatpush2.msra.mxu0 0.0
    %1566 = vmatprep.subr.mxu0 0.0
    %1567 = vmatpush2.msra.mxu0 0.0
    %1568 = vmatprep.subr.mxu0 0.0
    %1569 = vmatpush2.msra.mxu0 0.0
    %1570 = vmatprep.subr.mxu0 0.0
    %1571 = vmatpush2.msra.mxu0 0.0
    %1572 = vmatprep.subr.mxu0 0.0
    %1573 = vmatpush2.msra.mxu0 0.0
    %1574 = vmatprep.subr.mxu0 0.0
    %1575 = vmatpush2.msra.mxu0 0.0
    %1576 = vmatprep.subr.mxu0 0.0
    %1577 = vmatpush2.msra.mxu0 0.0
    %1578 = vmatprep.subr.mxu0 0.0
    %1579 = vmatpush2.msra.mxu0 0.0
    %1580 = vmatprep.subr.mxu0 0.0
    %1581 = vmatpush2.msra.mxu0 0.0
    %1582 = vmatprep.subr.mxu0 0.0
    %1583 = vmatpush2.msra.mxu0 0.0
    %1584 = vmatprep.subr.mxu0 0.0
    %1585 = vmatpush2.msra.mxu0 0.0
    %1586 = vmatprep.subr.mxu0 0.0
    %1587 = vmatpush2.msra.mxu0 0.0
    %1588 = vmatprep.subr.mxu0 0.0
    %1589 = vmatpush2.msra.mxu0 0.0
    %1590 = vmatprep.subr.mxu0 0.0
    %1591 = vmatpush2.msra.mxu0 0.0
    %1592 = vmatprep.subr.mxu0 0.0
    %1593 = vmatpush2.msra.mxu0 0.0
    %1594 = vmatprep.subr.mxu0 0.0
    %1595 = vmatpush2.msra.mxu0 0.0
    %1596 = vmatprep.mubr.f32.mxu0 0.0
    %1597 = vmatmul.mubr.f32.gmra.mxu0 %v1475
    %v1598 = vpop.f32.mrf.mxu0
    %v1599 = vadd.f32 %v376, %v1598
    %v1600 = vpop.f32.mrf.mxu0
    %v1601 = vadd.f32 %v380, %v1600
    %1602 = vdwg.mxu0
    %1603 = vmatprep.subr.mxu0 0.0
    %1604 = vmatpush1.msra.mxu0 %v1531
    %1605 = vmatprep.subr.mxu0 0.0
    %1606 = vmatpush1.msra.mxu0 %v1528
    %1607 = vmatprep.subr.mxu0 0.0
    %1608 = vmatpush1.msra.mxu0 %v1525
    %1609 = vmatprep.subr.mxu0 0.0
    %1610 = vmatpush1.msra.mxu0 %v1522
    %1611 = vmatprep.subr.mxu0 0.0
    %1612 = vmatpush1.msra.mxu0 %v1519
    %1613 = vmatprep.subr.mxu0 0.0
    %1614 = vmatpush1.msra.mxu0 %v1516
    %1615 = vmatprep.subr.mxu0 0.0
    %1616 = vmatpush1.msra.mxu0 %v1513
    %1617 = vmatprep.subr.mxu0 0.0
    %1618 = vmatpush1.msra.mxu0 %v1510
    %1619 = vmatprep.subr.mxu0 0.0
    %1620 = vmatpush1.msra.mxu0 %v1507
    %1621 = vmatprep.subr.mxu0 0.0
    %1622 = vmatpush1.msra.mxu0 %v1504
    %1623 = vmatprep.subr.mxu0 0.0
    %1624 = vmatpush1.msra.mxu0 %v1501
    %1625 = vmatprep.subr.mxu0 0.0
    %1626 = vmatpush1.msra.mxu0 %v1498
    %1627 = vmatprep.subr.mxu0 0.0
    %1628 = vmatpush1.msra.mxu0 %v1495
    %1629 = vmatprep.subr.mxu0 0.0
    %1630 = vmatpush1.msra.mxu0 %v1492
    %1631 = vmatprep.subr.mxu0 0.0
    %1632 = vmatpush1.msra.mxu0 %v1489
    %1633 = vmatprep.subr.mxu0 0.0
    %1634 = vmatpush1.msra.mxu0 %v1486
    %1635 = vmatprep.subr.mxu0 0.0
    %1636 = vmatpush2.msra.mxu0 0.0
    %1637 = vmatprep.subr.mxu0 0.0
    %1638 = vmatpush2.msra.mxu0 0.0
    %1639 = vmatprep.subr.mxu0 0.0
    %1640 = vmatpush2.msra.mxu0 0.0
    %1641 = vmatprep.subr.mxu0 0.0
    %1642 = vmatpush2.msra.mxu0 0.0
    %1643 = vmatprep.subr.mxu0 0.0
    %1644 = vmatpush2.msra.mxu0 0.0
    %1645 = vmatprep.subr.mxu0 0.0
    %1646 = vmatpush2.msra.mxu0 0.0
    %1647 = vmatprep.subr.mxu0 0.0
    %1648 = vmatpush2.msra.mxu0 0.0
    %1649 = vmatprep.subr.mxu0 0.0
    %1650 = vmatpush2.msra.mxu0 0.0
    %1651 = vmatprep.subr.mxu0 0.0
    %1652 = vmatpush2.msra.mxu0 0.0
    %1653 = vmatprep.subr.mxu0 0.0
    %1654 = vmatpush2.msra.mxu0 0.0
    %1655 = vmatprep.subr.mxu0 0.0
    %1656 = vmatpush2.msra.mxu0 0.0
    %1657 = vmatprep.subr.mxu0 0.0
    %1658 = vmatpush2.msra.mxu0 0.0
    %1659 = vmatprep.subr.mxu0 0.0
    %1660 = vmatpush2.msra.mxu0 0.0
    %1661 = vmatprep.subr.mxu0 0.0
    %1662 = vmatpush2.msra.mxu0 0.0
    %1663 = vmatprep.subr.mxu0 0.0
    %1664 = vmatpush2.msra.mxu0 0.0
    %1665 = vmatprep.subr.mxu0 0.0
    %1666 = vmatpush2.msra.mxu0 0.0
    %1667 = vmatprep.mubr.f32.mxu0 0.0
    %1668 = vmatmul.mubr.f32.gmra.mxu0 %v1475
    %v1669 = vpop.f32.mrf.mxu0
    %v1670 = vadd.f32 %v384, %v1669
    %v1671 = vpop.f32.mrf.mxu0
    %1672 = vdwg.mxu0
    %v1673 = vadd.f32 %v1481, %v1599
    %v1674 = vxor.u32 %v1673, 2147483648
    %v1675 = vmul.f32 %v1674, 1.442695
    %v1676 = vpow.pop %v1675
    %v1677 = vadd.f32 %v1676, 1.0
    %v1678 = vrcp.pop %v1677
    %v1679 = vmul.f32 1.0, %v1678
    %v1680 = vadd.f32 %v1482, %v1601
    %v1681 = vxor.u32 %v1680, 2147483648
    %v1682 = vmul.f32 %v1681, 1.442695
    %v1683 = vpow.pop %v1682
    %v1684 = vadd.f32 %v1683, 1.0
    %v1685 = vrcp.pop %v1684
    %v1686 = vmul.f32 1.0, %v1685
    %v1687 = vmul.f32 %v1679, %v1670
    %v1688 = vadd.f32 %v1483, %v1687
    %v1689 = vtanh.pop %v1688
    %v1690 = vsub.f32 1.0, %v1686
    %v1691 = vmul.f32 %v1690, %v1689
    %v1692 = vmul.f32 %v1686, %v1475
    %v1693 = vadd.f32 %v1691, %v1692
    %s1694 = scalar_lea.vmem [#allocation3], 40
    %1695 = vst [vmem:[%s1694] sm:$0xff] %v1693
    %s1696 = smul.u32 6, 3
    %s1697 = smul.addr %s1696, 8
    %s1698 = scalar_lea.vmem [#allocation2], %s1697
    %v1699 = vld [vmem:[%s1698] sm:$0xff]
    %v1700 = vld [vmem:[%s1698 + $0x8] sm:$0xff]
    %v1701 = vld [vmem:[%s1698 + $0x10] sm:$0xff]
    %v1702 = vld [vmem:[#allocation4] sm:$0xff]
    %v1703 = vld [vmem:[#allocation4 + $0x8] sm:$0xff]
    %v1704 = vld [vmem:[#allocation4 + $0x10] sm:$0xff]
    %v1705 = vld [vmem:[#allocation4 + $0x18] sm:$0xff]
    %v1706 = vld [vmem:[#allocation4 + $0x20] sm:$0xff]
    %v1707 = vld [vmem:[#allocation4 + $0x28] sm:$0xff]
    %v1708 = vld [vmem:[#allocation4 + $0x30] sm:$0xff]
    %v1709 = vld [vmem:[#allocation4 + $0x38] sm:$0xff]
    %v1710 = vld [vmem:[#allocation4 + $0x40] sm:$0xff]
    %v1711 = vld [vmem:[#allocation4 + $0x48] sm:$0xff]
    %v1712 = vld [vmem:[#allocation4 + $0x50] sm:$0xff]
    %v1713 = vld [vmem:[#allocation4 + $0x58] sm:$0xff]
    %v1714 = vld [vmem:[#allocation4 + $0x60] sm:$0xff]
    %v1715 = vld [vmem:[#allocation4 + $0x68] sm:$0xff]
    %v1716 = vld [vmem:[#allocation4 + $0x70] sm:$0xff]
    %v1717 = vld [vmem:[#allocation4 + $0x78] sm:$0xff]
    %v1718 = vld [vmem:[#allocation4 + $0x80] sm:$0xff]
    %v1719 = vld [vmem:[#allocation4 + $0x88] sm:$0xff]
    %v1720 = vld [vmem:[#allocation4 + $0x90] sm:$0xff]
    %v1721 = vld [vmem:[#allocation4 + $0x98] sm:$0xff]
    %v1722 = vld [vmem:[#allocation4 + $0xa0] sm:$0xff]
    %v1723 = vld [vmem:[#allocation4 + $0xa8] sm:$0xff]
    %v1724 = vld [vmem:[#allocation4 + $0xb0] sm:$0xff]
    %v1725 = vld [vmem:[#allocation4 + $0xb8] sm:$0xff]
    %v1726 = vld [vmem:[#allocation4 + $0xc0] sm:$0xff]
    %v1727 = vld [vmem:[#allocation4 + $0xc8] sm:$0xff]
    %v1728 = vld [vmem:[#allocation4 + $0xd0] sm:$0xff]
    %v1729 = vld [vmem:[#allocation4 + $0xd8] sm:$0xff]
    %v1730 = vld [vmem:[#allocation4 + $0xe0] sm:$0xff]
    %v1731 = vld [vmem:[#allocation4 + $0xe8] sm:$0xff]
    %v1732 = vld [vmem:[#allocation4 + $0xf0] sm:$0xff]
    %v1733 = vld [vmem:[#allocation4 + $0xf8] sm:$0xff]
    %v1734 = vld [vmem:[#allocation4 + $0x100] sm:$0xff]
    %v1735 = vld [vmem:[#allocation4 + $0x108] sm:$0xff]
    %v1736 = vld [vmem:[#allocation4 + $0x110] sm:$0xff]
    %v1737 = vld [vmem:[#allocation4 + $0x118] sm:$0xff]
    %v1738 = vld [vmem:[#allocation4 + $0x120] sm:$0xff]
    %v1739 = vld [vmem:[#allocation4 + $0x128] sm:$0xff]
    %v1740 = vld [vmem:[#allocation4 + $0x130] sm:$0xff]
    %v1741 = vld [vmem:[#allocation4 + $0x138] sm:$0xff]
    %v1742 = vld [vmem:[#allocation4 + $0x140] sm:$0xff]
    %v1743 = vld [vmem:[#allocation4 + $0x148] sm:$0xff]
    %v1744 = vld [vmem:[#allocation4 + $0x150] sm:$0xff]
    %v1745 = vld [vmem:[#allocation4 + $0x158] sm:$0xff]
    %v1746 = vld [vmem:[#allocation4 + $0x160] sm:$0xff]
    %v1747 = vld [vmem:[#allocation4 + $0x168] sm:$0xff]
    %v1748 = vld [vmem:[#allocation4 + $0x170] sm:$0xff]
    %v1749 = vld [vmem:[#allocation4 + $0x178] sm:$0xff]
    %1750 = vmatprep.subr.mxu0 %v1748
    %1751 = vmatpush1.msra.mxu0 %v1747
    %1752 = vmatprep.subr.mxu0 %v1745
    %1753 = vmatpush1.msra.mxu0 %v1744
    %1754 = vmatprep.subr.mxu0 %v1742
    %1755 = vmatpush1.msra.mxu0 %v1741
    %1756 = vmatprep.subr.mxu0 %v1739
    %1757 = vmatpush1.msra.mxu0 %v1738
    %1758 = vmatprep.subr.mxu0 %v1736
    %1759 = vmatpush1.msra.mxu0 %v1735
    %1760 = vmatprep.subr.mxu0 %v1733
    %1761 = vmatpush1.msra.mxu0 %v1732
    %1762 = vmatprep.subr.mxu0 %v1730
    %1763 = vmatpush1.msra.mxu0 %v1729
    %1764 = vmatprep.subr.mxu0 %v1727
    %1765 = vmatpush1.msra.mxu0 %v1726
    %1766 = vmatprep.subr.mxu0 %v1724
    %1767 = vmatpush1.msra.mxu0 %v1723
    %1768 = vmatprep.subr.mxu0 %v1721
    %1769 = vmatpush1.msra.mxu0 %v1720
    %1770 = vmatprep.subr.mxu0 %v1718
    %1771 = vmatpush1.msra.mxu0 %v1717
    %1772 = vmatprep.subr.mxu0 %v1715
    %1773 = vmatpush1.msra.mxu0 %v1714
    %1774 = vmatprep.subr.mxu0 %v1712
    %1775 = vmatpush1.msra.mxu0 %v1711
    %1776 = vmatprep.subr.mxu0 %v1709
    %1777 = vmatpush1.msra.mxu0 %v1708
    %1778 = vmatprep.subr.mxu0 %v1706
    %1779 = vmatpush1.msra.mxu0 %v1705
    %1780 = vmatprep.subr.mxu0 %v1703
    %1781 = vmatpush1.msra.mxu0 %v1702
    %1782 = vmatprep.subr.mxu0 0.0
    %1783 = vmatpush2.msra.mxu0 0.0
    %1784 = vmatprep.subr.mxu0 0.0
    %1785 = vmatpush2.msra.mxu0 0.0
    %1786 = vmatprep.subr.mxu0 0.0
    %1787 = vmatpush2.msra.mxu0 0.0
    %1788 = vmatprep.subr.mxu0 0.0
    %1789 = vmatpush2.msra.mxu0 0.0
    %1790 = vmatprep.subr.mxu0 0.0
    %1791 = vmatpush2.msra.mxu0 0.0
    %1792 = vmatprep.subr.mxu0 0.0
    %1793 = vmatpush2.msra.mxu0 0.0
    %1794 = vmatprep.subr.mxu0 0.0
    %1795 = vmatpush2.msra.mxu0 0.0
    %1796 = vmatprep.subr.mxu0 0.0
    %1797 = vmatpush2.msra.mxu0 0.0
    %1798 = vmatprep.subr.mxu0 0.0
    %1799 = vmatpush2.msra.mxu0 0.0
    %1800 = vmatprep.subr.mxu0 0.0
    %1801 = vmatpush2.msra.mxu0 0.0
    %1802 = vmatprep.subr.mxu0 0.0
    %1803 = vmatpush2.msra.mxu0 0.0
    %1804 = vmatprep.subr.mxu0 0.0
    %1805 = vmatpush2.msra.mxu0 0.0
    %1806 = vmatprep.subr.mxu0 0.0
    %1807 = vmatpush2.msra.mxu0 0.0
    %1808 = vmatprep.subr.mxu0 0.0
    %1809 = vmatpush2.msra.mxu0 0.0
    %1810 = vmatprep.subr.mxu0 0.0
    %1811 = vmatpush2.msra.mxu0 0.0
    %1812 = vmatprep.subr.mxu0 0.0
    %1813 = vmatpush2.msra.mxu0 0.0
    %1814 = vmatprep.mubr.f32.mxu0 0.0
    %1815 = vmatmul.mubr.f32.gmra.mxu0 %v1693
    %v1816 = vpop.f32.mrf.mxu0
    %v1817 = vadd.f32 %v376, %v1816
    %v1818 = vpop.f32.mrf.mxu0
    %v1819 = vadd.f32 %v380, %v1818
    %1820 = vdwg.mxu0
    %1821 = vmatprep.subr.mxu0 0.0
    %1822 = vmatpush1.msra.mxu0 %v1749
    %1823 = vmatprep.subr.mxu0 0.0
    %1824 = vmatpush1.msra.mxu0 %v1746
    %1825 = vmatprep.subr.mxu0 0.0
    %1826 = vmatpush1.msra.mxu0 %v1743
    %1827 = vmatprep.subr.mxu0 0.0
    %1828 = vmatpush1.msra.mxu0 %v1740
    %1829 = vmatprep.subr.mxu0 0.0
    %1830 = vmatpush1.msra.mxu0 %v1737
    %1831 = vmatprep.subr.mxu0 0.0
    %1832 = vmatpush1.msra.mxu0 %v1734
    %1833 = vmatprep.subr.mxu0 0.0
    %1834 = vmatpush1.msra.mxu0 %v1731
    %1835 = vmatprep.subr.mxu0 0.0
    %1836 = vmatpush1.msra.mxu0 %v1728
    %1837 = vmatprep.subr.mxu0 0.0
    %1838 = vmatpush1.msra.mxu0 %v1725
    %1839 = vmatprep.subr.mxu0 0.0
    %1840 = vmatpush1.msra.mxu0 %v1722
    %1841 = vmatprep.subr.mxu0 0.0
    %1842 = vmatpush1.msra.mxu0 %v1719
    %1843 = vmatprep.subr.mxu0 0.0
    %1844 = vmatpush1.msra.mxu0 %v1716
    %1845 = vmatprep.subr.mxu0 0.0
    %1846 = vmatpush1.msra.mxu0 %v1713
    %1847 = vmatprep.subr.mxu0 0.0
    %1848 = vmatpush1.msra.mxu0 %v1710
    %1849 = vmatprep.subr.mxu0 0.0
    %1850 = vmatpush1.msra.mxu0 %v1707
    %1851 = vmatprep.subr.mxu0 0.0
    %1852 = vmatpush1.msra.mxu0 %v1704
    %1853 = vmatprep.subr.mxu0 0.0
    %1854 = vmatpush2.msra.mxu0 0.0
    %1855 = vmatprep.subr.mxu0 0.0
    %1856 = vmatpush2.msra.mxu0 0.0
    %1857 = vmatprep.subr.mxu0 0.0
    %1858 = vmatpush2.msra.mxu0 0.0
    %1859 = vmatprep.subr.mxu0 0.0
    %1860 = vmatpush2.msra.mxu0 0.0
    %1861 = vmatprep.subr.mxu0 0.0
    %1862 = vmatpush2.msra.mxu0 0.0
    %1863 = vmatprep.subr.mxu0 0.0
    %1864 = vmatpush2.msra.mxu0 0.0
    %1865 = vmatprep.subr.mxu0 0.0
    %1866 = vmatpush2.msra.mxu0 0.0
    %1867 = vmatprep.subr.mxu0 0.0
    %1868 = vmatpush2.msra.mxu0 0.0
    %1869 = vmatprep.subr.mxu0 0.0
    %1870 = vmatpush2.msra.mxu0 0.0
    %1871 = vmatprep.subr.mxu0 0.0
    %1872 = vmatpush2.msra.mxu0 0.0
    %1873 = vmatprep.subr.mxu0 0.0
    %1874 = vmatpush2.msra.mxu0 0.0
    %1875 = vmatprep.subr.mxu0 0.0
    %1876 = vmatpush2.msra.mxu0 0.0
    %1877 = vmatprep.subr.mxu0 0.0
    %1878 = vmatpush2.msra.mxu0 0.0
    %1879 = vmatprep.subr.mxu0 0.0
    %1880 = vmatpush2.msra.mxu0 0.0
    %1881 = vmatprep.subr.mxu0 0.0
    %1882 = vmatpush2.msra.mxu0 0.0
    %1883 = vmatprep.subr.mxu0 0.0
    %1884 = vmatpush2.msra.mxu0 0.0
    %1885 = vmatprep.mubr.f32.mxu0 0.0
    %1886 = vmatmul.mubr.f32.gmra.mxu0 %v1693
    %v1887 = vpop.f32.mrf.mxu0
    %v1888 = vadd.f32 %v384, %v1887
    %v1889 = vpop.f32.mrf.mxu0
    %1890 = vdwg.mxu0
    %v1891 = vadd.f32 %v1699, %v1817
    %v1892 = vxor.u32 %v1891, 2147483648
    %v1893 = vmul.f32 %v1892, 1.442695
    %v1894 = vpow.pop %v1893
    %v1895 = vadd.f32 %v1894, 1.0
    %v1896 = vrcp.pop %v1895
    %v1897 = vmul.f32 1.0, %v1896
    %v1898 = vadd.f32 %v1700, %v1819
    %v1899 = vxor.u32 %v1898, 2147483648
    %v1900 = vmul.f32 %v1899, 1.442695
    %v1901 = vpow.pop %v1900
    %v1902 = vadd.f32 %v1901, 1.0
    %v1903 = vrcp.pop %v1902
    %v1904 = vmul.f32 1.0, %v1903
    %v1905 = vmul.f32 %v1897, %v1888
    %v1906 = vadd.f32 %v1701, %v1905
    %v1907 = vtanh.pop %v1906
    %v1908 = vsub.f32 1.0, %v1904
    %v1909 = vmul.f32 %v1908, %v1907
    %v1910 = vmul.f32 %v1904, %v1693
    %v1911 = vadd.f32 %v1909, %v1910
    %s1912 = scalar_lea.vmem [#allocation3], 48
    %1913 = vst [vmem:[%s1912] sm:$0xff] %v1911
    %s1914 = smul.u32 7, 3
    %s1915 = smul.addr %s1914, 8
    %s1916 = scalar_lea.vmem [#allocation2], %s1915
    %v1917 = vld [vmem:[%s1916] sm:$0xff]
    %v1918 = vld [vmem:[%s1916 + $0x8] sm:$0xff]
    %v1919 = vld [vmem:[%s1916 + $0x10] sm:$0xff]
    %v1920 = vld [vmem:[#allocation4] sm:$0xff]
    %v1921 = vld [vmem:[#allocation4 + $0x8] sm:$0xff]
    %v1922 = vld [vmem:[#allocation4 + $0x10] sm:$0xff]
    %v1923 = vld [vmem:[#allocation4 + $0x18] sm:$0xff]
    %v1924 = vld [vmem:[#allocation4 + $0x20] sm:$0xff]
    %v1925 = vld [vmem:[#allocation4 + $0x28] sm:$0xff]
    %v1926 = vld [vmem:[#allocation4 + $0x30] sm:$0xff]
    %v1927 = vld [vmem:[#allocation4 + $0x38] sm:$0xff]
    %v1928 = vld [vmem:[#allocation4 + $0x40] sm:$0xff]
    %v1929 = vld [vmem:[#allocation4 + $0x48] sm:$0xff]
    %v1930 = vld [vmem:[#allocation4 + $0x50] sm:$0xff]
    %v1931 = vld [vmem:[#allocation4 + $0x58] sm:$0xff]
    %v1932 = vld [vmem:[#allocation4 + $0x60] sm:$0xff]
    %v1933 = vld [vmem:[#allocation4 + $0x68] sm:$0xff]
    %v1934 = vld [vmem:[#allocation4 + $0x70] sm:$0xff]
    %v1935 = vld [vmem:[#allocation4 + $0x78] sm:$0xff]
    %v1936 = vld [vmem:[#allocation4 + $0x80] sm:$0xff]
    %v1937 = vld [vmem:[#allocation4 + $0x88] sm:$0xff]
    %v1938 = vld [vmem:[#allocation4 + $0x90] sm:$0xff]
    %v1939 = vld [vmem:[#allocation4 + $0x98] sm:$0xff]
    %v1940 = vld [vmem:[#allocation4 + $0xa0] sm:$0xff]
    %v1941 = vld [vmem:[#allocation4 + $0xa8] sm:$0xff]
    %v1942 = vld [vmem:[#allocation4 + $0xb0] sm:$0xff]
    %v1943 = vld [vmem:[#allocation4 + $0xb8] sm:$0xff]
    %v1944 = vld [vmem:[#allocation4 + $0xc0] sm:$0xff]
    %v1945 = vld [vmem:[#allocation4 + $0xc8] sm:$0xff]
    %v1946 = vld [vmem:[#allocation4 + $0xd0] sm:$0xff]
    %v1947 = vld [vmem:[#allocation4 + $0xd8] sm:$0xff]
    %v1948 = vld [vmem:[#allocation4 + $0xe0] sm:$0xff]
    %v1949 = vld [vmem:[#allocation4 + $0xe8] sm:$0xff]
    %v1950 = vld [vmem:[#allocation4 + $0xf0] sm:$0xff]
    %v1951 = vld [vmem:[#allocation4 + $0xf8] sm:$0xff]
    %v1952 = vld [vmem:[#allocation4 + $0x100] sm:$0xff]
    %v1953 = vld [vmem:[#allocation4 + $0x108] sm:$0xff]
    %v1954 = vld [vmem:[#allocation4 + $0x110] sm:$0xff]
    %v1955 = vld [vmem:[#allocation4 + $0x118] sm:$0xff]
    %v1956 = vld [vmem:[#allocation4 + $0x120] sm:$0xff]
    %v1957 = vld [vmem:[#allocation4 + $0x128] sm:$0xff]
    %v1958 = vld [vmem:[#allocation4 + $0x130] sm:$0xff]
    %v1959 = vld [vmem:[#allocation4 + $0x138] sm:$0xff]
    %v1960 = vld [vmem:[#allocation4 + $0x140] sm:$0xff]
    %v1961 = vld [vmem:[#allocation4 + $0x148] sm:$0xff]
    %v1962 = vld [vmem:[#allocation4 + $0x150] sm:$0xff]
    %v1963 = vld [vmem:[#allocation4 + $0x158] sm:$0xff]
    %v1964 = vld [vmem:[#allocation4 + $0x160] sm:$0xff]
    %v1965 = vld [vmem:[#allocation4 + $0x168] sm:$0xff]
    %v1966 = vld [vmem:[#allocation4 + $0x170] sm:$0xff]
    %v1967 = vld [vmem:[#allocation4 + $0x178] sm:$0xff]
    %1968 = vmatprep.subr.mxu0 %v1966
    %1969 = vmatpush1.msra.mxu0 %v1965
    %1970 = vmatprep.subr.mxu0 %v1963
    %1971 = vmatpush1.msra.mxu0 %v1962
    %1972 = vmatprep.subr.mxu0 %v1960
    %1973 = vmatpush1.msra.mxu0 %v1959
    %1974 = vmatprep.subr.mxu0 %v1957
    %1975 = vmatpush1.msra.mxu0 %v1956
    %1976 = vmatprep.subr.mxu0 %v1954
    %1977 = vmatpush1.msra.mxu0 %v1953
    %1978 = vmatprep.subr.mxu0 %v1951
    %1979 = vmatpush1.msra.mxu0 %v1950
    %1980 = vmatprep.subr.mxu0 %v1948
    %1981 = vmatpush1.msra.mxu0 %v1947
    %1982 = vmatprep.subr.mxu0 %v1945
    %1983 = vmatpush1.msra.mxu0 %v1944
    %1984 = vmatprep.subr.mxu0 %v1942
    %1985 = vmatpush1.msra.mxu0 %v1941
    %1986 = vmatprep.subr.mxu0 %v1939
    %1987 = vmatpush1.msra.mxu0 %v1938
    %1988 = vmatprep.subr.mxu0 %v1936
    %1989 = vmatpush1.msra.mxu0 %v1935
    %1990 = vmatprep.subr.mxu0 %v1933
    %1991 = vmatpush1.msra.mxu0 %v1932
    %1992 = vmatprep.subr.mxu0 %v1930
    %1993 = vmatpush1.msra.mxu0 %v1929
    %1994 = vmatprep.subr.mxu0 %v1927
    %1995 = vmatpush1.msra.mxu0 %v1926
    %1996 = vmatprep.subr.mxu0 %v1924
    %1997 = vmatpush1.msra.mxu0 %v1923
    %1998 = vmatprep.subr.mxu0 %v1921
    %1999 = vmatpush1.msra.mxu0 %v1920
    %2000 = vmatprep.subr.mxu0 0.0
    %2001 = vmatpush2.msra.mxu0 0.0
    %2002 = vmatprep.subr.mxu0 0.0
    %2003 = vmatpush2.msra.mxu0 0.0
    %2004 = vmatprep.subr.mxu0 0.0
    %2005 = vmatpush2.msra.mxu0 0.0
    %2006 = vmatprep.subr.mxu0 0.0
    %2007 = vmatpush2.msra.mxu0 0.0
    %2008 = vmatprep.subr.mxu0 0.0
    %2009 = vmatpush2.msra.mxu0 0.0
    %2010 = vmatprep.subr.mxu0 0.0
    %2011 = vmatpush2.msra.mxu0 0.0
    %2012 = vmatprep.subr.mxu0 0.0
    %2013 = vmatpush2.msra.mxu0 0.0
    %2014 = vmatprep.subr.mxu0 0.0
    %2015 = vmatpush2.msra.mxu0 0.0
    %2016 = vmatprep.subr.mxu0 0.0
    %2017 = vmatpush2.msra.mxu0 0.0
    %2018 = vmatprep.subr.mxu0 0.0
    %2019 = vmatpush2.msra.mxu0 0.0
    %2020 = vmatprep.subr.mxu0 0.0
    %2021 = vmatpush2.msra.mxu0 0.0
    %2022 = vmatprep.subr.mxu0 0.0
    %2023 = vmatpush2.msra.mxu0 0.0
    %2024 = vmatprep.subr.mxu0 0.0
    %2025 = vmatpush2.msra.mxu0 0.0
    %2026 = vmatprep.subr.mxu0 0.0
    %2027 = vmatpush2.msra.mxu0 0.0
    %2028 = vmatprep.subr.mxu0 0.0
    %2029 = vmatpush2.msra.mxu0 0.0
    %2030 = vmatprep.subr.mxu0 0.0
    %2031 = vmatpush2.msra.mxu0 0.0
    %2032 = vmatprep.mubr.f32.mxu0 0.0
    %2033 = vmatmul.mubr.f32.gmra.mxu0 %v1911
    %v2034 = vpop.f32.mrf.mxu0
    %v2035 = vadd.f32 %v376, %v2034
    %v2036 = vpop.f32.mrf.mxu0
    %v2037 = vadd.f32 %v380, %v2036
    %2038 = vdwg.mxu0
    %2039 = vmatprep.subr.mxu0 0.0
    %2040 = vmatpush1.msra.mxu0 %v1967
    %2041 = vmatprep.subr.mxu0 0.0
    %2042 = vmatpush1.msra.mxu0 %v1964
    %2043 = vmatprep.subr.mxu0 0.0
    %2044 = vmatpush1.msra.mxu0 %v1961
    %2045 = vmatprep.subr.mxu0 0.0
    %2046 = vmatpush1.msra.mxu0 %v1958
    %2047 = vmatprep.subr.mxu0 0.0
    %2048 = vmatpush1.msra.mxu0 %v1955
    %2049 = vmatprep.subr.mxu0 0.0
    %2050 = vmatpush1.msra.mxu0 %v1952
    %2051 = vmatprep.subr.mxu0 0.0
    %2052 = vmatpush1.msra.mxu0 %v1949
    %2053 = vmatprep.subr.mxu0 0.0
    %2054 = vmatpush1.msra.mxu0 %v1946
    %2055 = vmatprep.subr.mxu0 0.0
    %2056 = vmatpush1.msra.mxu0 %v1943
    %2057 = vmatprep.subr.mxu0 0.0
    %2058 = vmatpush1.msra.mxu0 %v1940
    %2059 = vmatprep.subr.mxu0 0.0
    %2060 = vmatpush1.msra.mxu0 %v1937
    %2061 = vmatprep.subr.mxu0 0.0
    %2062 = vmatpush1.msra.mxu0 %v1934
    %2063 = vmatprep.subr.mxu0 0.0
    %2064 = vmatpush1.msra.mxu0 %v1931
    %2065 = vmatprep.subr.mxu0 0.0
    %2066 = vmatpush1.msra.mxu0 %v1928
    %2067 = vmatprep.subr.mxu0 0.0
    %2068 = vmatpush1.msra.mxu0 %v1925
    %2069 = vmatprep.subr.mxu0 0.0
    %2070 = vmatpush1.msra.mxu0 %v1922
    %2071 = vmatprep.subr.mxu0 0.0
    %2072 = vmatpush2.msra.mxu0 0.0
    %2073 = vmatprep.subr.mxu0 0.0
    %2074 = vmatpush2.msra.mxu0 0.0
    %2075 = vmatprep.subr.mxu0 0.0
    %2076 = vmatpush2.msra.mxu0 0.0
    %2077 = vmatprep.subr.mxu0 0.0
    %2078 = vmatpush2.msra.mxu0 0.0
    %2079 = vmatprep.subr.mxu0 0.0
    %2080 = vmatpush2.msra.mxu0 0.0
    %2081 = vmatprep.subr.mxu0 0.0
    %2082 = vmatpush2.msra.mxu0 0.0
    %2083 = vmatprep.subr.mxu0 0.0
    %2084 = vmatpush2.msra.mxu0 0.0
    %2085 = vmatprep.subr.mxu0 0.0
    %2086 = vmatpush2.msra.mxu0 0.0
    %2087 = vmatprep.subr.mxu0 0.0
    %2088 = vmatpush2.msra.mxu0 0.0
    %2089 = vmatprep.subr.mxu0 0.0
    %2090 = vmatpush2.msra.mxu0 0.0
    %2091 = vmatprep.subr.mxu0 0.0
    %2092 = vmatpush2.msra.mxu0 0.0
    %2093 = vmatprep.subr.mxu0 0.0
    %2094 = vmatpush2.msra.mxu0 0.0
    %2095 = vmatprep.subr.mxu0 0.0
    %2096 = vmatpush2.msra.mxu0 0.0
    %2097 = vmatprep.subr.mxu0 0.0
    %2098 = vmatpush2.msra.mxu0 0.0
    %2099 = vmatprep.subr.mxu0 0.0
    %2100 = vmatpush2.msra.mxu0 0.0
    %2101 = vmatprep.subr.mxu0 0.0
    %2102 = vmatpush2.msra.mxu0 0.0
    %2103 = vmatprep.mubr.f32.mxu0 0.0
    %2104 = vmatmul.mubr.f32.gmra.mxu0 %v1911
    %v2105 = vpop.f32.mrf.mxu0
    %v2106 = vadd.f32 %v384, %v2105
    %v2107 = vpop.f32.mrf.mxu0
    %2108 = vdwg.mxu0
    %v2109 = vadd.f32 %v1917, %v2035
    %v2110 = vxor.u32 %v2109, 2147483648
    %v2111 = vmul.f32 %v2110, 1.442695
    %v2112 = vpow.pop %v2111
    %v2113 = vadd.f32 %v2112, 1.0
    %v2114 = vrcp.pop %v2113
    %v2115 = vmul.f32 1.0, %v2114
    %v2116 = vadd.f32 %v1918, %v2037
    %v2117 = vxor.u32 %v2116, 2147483648
    %v2118 = vmul.f32 %v2117, 1.442695
    %v2119 = vpow.pop %v2118
    %v2120 = vadd.f32 %v2119, 1.0
    %v2121 = vrcp.pop %v2120
    %v2122 = vmul.f32 1.0, %v2121
    %v2123 = vmul.f32 %v2115, %v2106
    %v2124 = vadd.f32 %v1919, %v2123
    %v2125 = vtanh.pop %v2124
    %v2126 = vsub.f32 1.0, %v2122
    %v2127 = vmul.f32 %v2126, %v2125
    %v2128 = vmul.f32 %v2122, %v1911
    %v2129 = vadd.f32 %v2127, %v2128
    %s2130 = scalar_lea.vmem [#allocation3], 56
    %2131 = vst [vmem:[%s2130] sm:$0xff] %v2129
    %v2132 = vld [vmem:[#allocation3] sm:$0xff]
    %v2133 = vld [vmem:[#allocation3 + $0x8] sm:$0xff]
    %v2134 = vld [vmem:[#allocation3 + $0x10] sm:$0xff]
    %v2135 = vld [vmem:[#allocation3 + $0x18] sm:$0xff]
    %v2136 = vld [vmem:[#allocation3 + $0x20] sm:$0xff]
    %v2137 = vld [vmem:[#allocation3 + $0x28] sm:$0xff]
    %v2138 = vld [vmem:[#allocation3 + $0x30] sm:$0xff]
    %v2139 = vld [vmem:[#allocation3 + $0x38] sm:$0xff]
    %v2140 = vld [vmem:[#allocation7] sm:$0xff]
    %v2141 = vld [vmem:[#allocation7 + $0x8] sm:$0xff]
    %v2142 = vld [vmem:[#allocation7 + $0x10] sm:$0xff]
    %v2143 = vld [vmem:[#allocation7 + $0x18] sm:$0xff]
    %v2144 = vld [vmem:[#allocation7 + $0x20] sm:$0xff]
    %v2145 = vld [vmem:[#allocation7 + $0x28] sm:$0xff]
    %v2146 = vld [vmem:[#allocation7 + $0x30] sm:$0xff]
    %v2147 = vld [vmem:[#allocation7 + $0x38] sm:$0xff]
    %v2148 = vld [vmem:[#allocation7 + $0x40] sm:$0xff]
    %v2149 = vld [vmem:[#allocation7 + $0x48] sm:$0xff]
    %v2150 = vld [vmem:[#allocation7 + $0x50] sm:$0xff]
    %v2151 = vld [vmem:[#allocation7 + $0x58] sm:$0xff]
    %v2152 = vld [vmem:[#allocation7 + $0x60] sm:$0xff]
    %v2153 = vld [vmem:[#allocation7 + $0x68] sm:$0xff]
    %v2154 = vld [vmem:[#allocation7 + $0x70] sm:$0xff]
    %v2155 = vld [vmem:[#allocation7 + $0x78] sm:$0xff]
    %v2156 = vld [vmem:[%s7] sm:$0x1]
    %v2158 = vlaneseq
    %v2159 = vshrl.u32 %v2158, 7
    %v2160 = vsub.s32 0, %v2159
    %v2161 = vrot.slane %v2156, %v2160
    %2163 = vmatprep.subr.mxu0 0.0
    %2164 = vmatpush1.msra.mxu0 %v2155
    %2165 = vmatprep.subr.mxu0 0.0
    %2166 = vmatpush1.msra.mxu0 %v2154
    %2167 = vmatprep.subr.mxu0 0.0
    %2168 = vmatpush1.msra.mxu0 %v2153
    %2169 = vmatprep.subr.mxu0 0.0
    %2170 = vmatpush1.msra.mxu0 %v2152
    %2171 = vmatprep.subr.mxu0 0.0
    %2172 = vmatpush1.msra.mxu0 %v2151
    %2173 = vmatprep.subr.mxu0 0.0
    %2174 = vmatpush1.msra.mxu0 %v2150
    %2175 = vmatprep.subr.mxu0 0.0
    %2176 = vmatpush1.msra.mxu0 %v2149
    %2177 = vmatprep.subr.mxu0 0.0
    %2178 = vmatpush1.msra.mxu0 %v2148
    %2179 = vmatprep.subr.mxu0 0.0
    %2180 = vmatpush1.msra.mxu0 %v2147
    %2181 = vmatprep.subr.mxu0 0.0
    %2182 = vmatpush1.msra.mxu0 %v2146
    %2183 = vmatprep.subr.mxu0 0.0
    %2184 = vmatpush1.msra.mxu0 %v2145
    %2185 = vmatprep.subr.mxu0 0.0
    %2186 = vmatpush1.msra.mxu0 %v2144
    %2187 = vmatprep.subr.mxu0 0.0
    %2188 = vmatpush1.msra.mxu0 %v2143
    %2189 = vmatprep.subr.mxu0 0.0
    %2190 = vmatpush1.msra.mxu0 %v2142
    %2191 = vmatprep.subr.mxu0 0.0
    %2192 = vmatpush1.msra.mxu0 %v2141
    %2193 = vmatprep.subr.mxu0 0.0
    %2194 = vmatpush1.msra.mxu0 %v2140
    %2195 = vmatprep.subr.mxu0 0.0
    %2196 = vmatpush2.msra.mxu0 0.0
    %2197 = vmatprep.subr.mxu0 0.0
    %2198 = vmatpush2.msra.mxu0 0.0
    %2199 = vmatprep.subr.mxu0 0.0
    %2200 = vmatpush2.msra.mxu0 0.0
    %2201 = vmatprep.subr.mxu0 0.0
    %2202 = vmatpush2.msra.mxu0 0.0
    %2203 = vmatprep.subr.mxu0 0.0
    %2204 = vmatpush2.msra.mxu0 0.0
    %2205 = vmatprep.subr.mxu0 0.0
    %2206 = vmatpush2.msra.mxu0 0.0
    %2207 = vmatprep.subr.mxu0 0.0
    %2208 = vmatpush2.msra.mxu0 0.0
    %2209 = vmatprep.subr.mxu0 0.0
    %2210 = vmatpush2.msra.mxu0 0.0
    %2211 = vmatprep.subr.mxu0 0.0
    %2212 = vmatpush2.msra.mxu0 0.0
    %2213 = vmatprep.subr.mxu0 0.0
    %2214 = vmatpush2.msra.mxu0 0.0
    %2215 = vmatprep.subr.mxu0 0.0
    %2216 = vmatpush2.msra.mxu0 0.0
    %2217 = vmatprep.subr.mxu0 0.0
    %2218 = vmatpush2.msra.mxu0 0.0
    %2219 = vmatprep.subr.mxu0 0.0
    %2220 = vmatpush2.msra.mxu0 0.0
    %2221 = vmatprep.subr.mxu0 0.0
    %2222 = vmatpush2.msra.mxu0 0.0
    %2223 = vmatprep.subr.mxu0 0.0
    %2224 = vmatpush2.msra.mxu0 0.0
    %2225 = vmatprep.subr.mxu0 0.0
    %2226 = vmatpush2.msra.mxu0 0.0
    %2227 = vmatprep.mubr.f32.mxu0 0.0
    %2228 = vmatmul.mubr.f32.gmra.mxu0 %v2132
    %v2229 = vpop.f32.mrf.mxu0
    %v2230 = vadd.f32 %v2161, %v2229
    %v2231 = vpop.f32.mrf.mxu0
    %2232 = vmatprep.mubr.f32.mxu0 0.0
    %2233 = vmatmul.mubr.f32.gmra.mxu0 %v2133
    %v2234 = vpop.f32.mrf.mxu0
    %v2235 = vadd.f32 %v2161, %v2234
    %v2236 = vpop.f32.mrf.mxu0
    %2237 = vmatprep.mubr.f32.mxu0 0.0
    %2238 = vmatmul.mubr.f32.gmra.mxu0 %v2134
    %v2239 = vpop.f32.mrf.mxu0
    %v2240 = vadd.f32 %v2161, %v2239
    %v2241 = vpop.f32.mrf.mxu0
    %2242 = vmatprep.mubr.f32.mxu0 0.0
    %2243 = vmatmul.mubr.f32.gmra.mxu0 %v2135
    %v2244 = vpop.f32.mrf.mxu0
    %v2245 = vadd.f32 %v2161, %v2244
    %v2246 = vpop.f32.mrf.mxu0
    %2247 = vmatprep.mubr.f32.mxu0 0.0
    %2248 = vmatmul.mubr.f32.gmra.mxu0 %v2136
    %v2249 = vpop.f32.mrf.mxu0
    %v2250 = vadd.f32 %v2161, %v2249
    %v2251 = vpop.f32.mrf.mxu0
    %2252 = vmatprep.mubr.f32.mxu0 0.0
    %2253 = vmatmul.mubr.f32.gmra.mxu0 %v2137
    %v2254 = vpop.f32.mrf.mxu0
    %v2255 = vadd.f32 %v2161, %v2254
    %v2256 = vpop.f32.mrf.mxu0
    %2257 = vmatprep.mubr.f32.mxu0 0.0
    %2258 = vmatmul.mubr.f32.gmra.mxu0 %v2138
    %v2259 = vpop.f32.mrf.mxu0
    %v2260 = vadd.f32 %v2161, %v2259
    %v2261 = vpop.f32.mrf.mxu0
    %2262 = vmatprep.mubr.f32.mxu0 0.0
    %2263 = vmatmul.mubr.f32.gmra.mxu0 %v2139
    %v2264 = vpop.f32.mrf.mxu0
    %v2265 = vadd.f32 %v2161, %v2264
    %v2266 = vpop.f32.mrf.mxu0
    %2267 = vdwg.mxu0
    %2268 = vst [vmem:[#allocation9] sm:$0xff] %v2230
    %2269 = vst [vmem:[#allocation9 + $0x8] sm:$0xff] %v2235
    %2270 = vst [vmem:[#allocation9 + $0x10] sm:$0xff] %v2240
    %2271 = vst [vmem:[#allocation9 + $0x18] sm:$0xff] %v2245
    %2272 = vst [vmem:[#allocation9 + $0x20] sm:$0xff] %v2250
    %2273 = vst [vmem:[#allocation9 + $0x28] sm:$0xff] %v2255
    %2274 = vst [vmem:[#allocation9 + $0x30] sm:$0xff] %v2260
    %2275 = vst [vmem:[#allocation9 + $0x38] sm:$0xff] %v2265
    // Predicated region
    $region42: #{tpu_custom_call.1} parent=1 // pred_check
      _
    $region43: #{tpu_custom_call.1} parent=1 // pred_check_branch
      %2277 = sbr.rel (0) target = $region45
    $region44: #{tpu_custom_call.1} parent=1 // pred_region
      %s2279 = ssub.s32 1024, 1024
      %2280 = vsyncadd [#allocation6], %s2279
      %s2281 = sshll.u32 [#allocation9], 4
      %s2282 = int_to_ptr.vmem [resolvable:$true] %s2281
      %2287 = dma.vmem_to_hbm [thread:$0]  %s2282, 1024, %s8, [#allocation6], 128, 128, 8
    $region45: #{tpu_custom_call.1} parent=1 // pred_fallthru
      _
    // Predicated region
    $region46: #{tpu_custom_call.1} parent=1 // pred_check
      _
    $region47: #{tpu_custom_call.1} parent=1 // pred_check_branch
      %2289 = sbr.rel (0) target = $region49
    $region48: #{tpu_custom_call.1} parent=1 // pred_region
      %2290 = dma.done [#allocation6], 1024
    $region49: #{tpu_custom_call.1} parent=1 // pred_fallthru
      _
    %2291 = vsyncpa [#allocation5], 1
    %2292 = vsyncpa [#allocation8], 1
    %2293 = vsyncpa [#allocation6], 1

</llo_original>
